<compile_context>
chip_gen: v7x
topology: tpu7x:2x2x1
jax: 0.10.0
libtpu: 0.0.40
codegen_flags: <defaults>
</compile_context>

<pallas_src>
import jax
import jax.numpy as jnp
from jax import lax
from jax.experimental import pallas as pl
from jax.experimental.pallas import tpu as pltpu

TOPK = 32


# ----------------------------- Pallas kernel -------------------------------- #
def _warp_kernel(pts_ref, trans_ref, kpt_ref, radsq_ref, delta_ref, out_ref):
    p = pts_ref[...]                                   # [3, TM] f32
    px, py, pz = p[0:1, :], p[1:2, :], p[2:3, :]       # [1, TM]

    # p' = R @ p + t; 12 transform scalars live in SMEM (constant indices).
    def tr(c, d):
        return trans_ref[c * 4 + d]

    pw = [tr(c, 0) * px + tr(c, 1) * py + tr(c, 2) * pz + tr(c, 3)
          for c in range(3)]                           # 3 x [1, TM]

    kpt = kpt_ref[...]                                 # [Kp8, 3]
    dx = kpt[:, 0:1] - pw[0]                           # [Kp8, TM]
    dy = kpt[:, 1:2] - pw[1]
    dz = kpt[:, 2:3] - pw[2]
    d2 = dx * dx + dy * dy + dz * dz                   # squared distances

    # Hoisted EUP work: the per-dim RBF weights are computed BEFORE the
    # VALU/XLU-bound selection loop; the loop below is a static unroll so the
    # scheduler can hide the exp latency under the selection rounds.
    radsq = radsq_ref[...]                             # [Kp8, 3]
    w0 = jnp.maximum(jnp.exp(-d2 * radsq[:, 0:1]), 1e-10)
    w1 = jnp.maximum(jnp.exp(-d2 * radsq[:, 1:2]), 1e-10)
    w2 = jnp.maximum(jnp.exp(-d2 * radsq[:, 2:3]), 1e-10)

    # Top-32 smallest per point (per lane): knock out the (Kp8-32) LARGEST
    # distances; survivors are exactly the 32 nearest keypoints.  d2 >= 0, so
    # -1 is a collision-free "knocked out" sentinel.
    n_knock = d2.shape[0] - TOPK                       # static (16 for K=48)
    dw = d2
    for _ in range(n_knock):                           # fully unrolled
        mx = jnp.max(dw, axis=0, keepdims=True)        # [1, TM]
        dw = jnp.where(dw == mx, jnp.float32(-1.0), dw)
    sel = dw >= jnp.float32(0.0)                       # [Kp8, TM] survivors

    zero = jnp.float32(0.0)
    w0 = jnp.where(sel, w0, zero)
    w1 = jnp.where(sel, w1, zero)
    w2 = jnp.where(sel, w2, zero)

    delta = delta_ref[...]                             # [Kp8, 3] = canon - kpt
    # Lane-dense direct row stores (no sublane concatenate on the epilogue).
    out_ref[0:1, :] = pw[0] + (jnp.sum(w0 * delta[:, 0:1], axis=0, keepdims=True)
                               / jnp.sum(w0, axis=0, keepdims=True))
    out_ref[1:2, :] = pw[1] + (jnp.sum(w1 * delta[:, 1:2], axis=0, keepdims=True)
                               / jnp.sum(w1, axis=0, keepdims=True))
    out_ref[2:3, :] = pw[2] + (jnp.sum(w2 * delta[:, 2:3], axis=0, keepdims=True)
                               / jnp.sum(w2, axis=0, keepdims=True))


# ------------------------------- wrapper ------------------------------------ #
def warp_kpt_forward(pts, t_array, params, *, tm=256):
    ori_shape = pts.shape
    pts2 = jnp.asarray(pts, jnp.float32).reshape(-1, 3)
    m = pts2.shape[0]

    # Lane-dense tiling; cap tm so the 1-D parallel grid has >= 2 steps when
    # possible (keeps both TensorCores busy on v7x).
    tm = max(128, (int(tm) // 128) * 128)
    m128 = ((m + 127) // 128) * 128
    if m128 >= 256:
        tm = min(tm, (m128 // 2 // 128) * 128)
    else:
        tm = 128
    mp = ((m + tm - 1) // tm) * tm

    # points on lanes
    ptsT = jnp.zeros((3, mp), jnp.float32).at[:, :m].set(pts2.T)

    trans = jnp.asarray(params["transform"], jnp.float32)              # [T,3,4]
    kpt_all = jnp.asarray(params["kpt3d"], jnp.float32)                # [T,K,3]
    radius = jnp.asarray(params["kpt3d_bias_radius"], jnp.float32)[0]  # [K,3]
    canon = jnp.asarray(params["kpt3d_canonical"], jnp.float32)[0]     # [K,3]

    k = kpt_all.shape[1]
    assert k >= TOPK, f"WarpKptAdvanced kernel needs >= {TOPK} keypoints, got {k}"
    kp8 = ((k + 7) // 8) * 8

    # single shared frame index (torch path); traced -> no host sync, jittable
    t = jnp.reshape(t_array, (-1,))[0].astype(jnp.int32)
    trans_t = trans[t]                                                 # [3,4]
    kpt_t = kpt_all[t]                                                 # [K,3]

    radsq = radius * radius                                            # [K,3]
    delta = canon - kpt_t                                              # [K,3]

    n_pad = kp8 - k
    if n_pad:
        # distinct far-away pads: each one is knocked out in its own round, so
        # exactly the 32 nearest real keypoints survive.
        padv = 1e4 * (1.0 + jnp.arange(n_pad, dtype=jnp.float32))[:, None]
        kpt_p = jnp.concatenate([kpt_t, jnp.broadcast_to(padv, (n_pad, 3))], 0)
        radsq_p = jnp.concatenate([radsq, jnp.zeros((n_pad, 3), jnp.float32)], 0)
        delta_p = jnp.concatenate([delta, jnp.zeros((n_pad, 3), jnp.float32)], 0)
    else:
        kpt_p, radsq_p, delta_p = kpt_t, radsq, delta

    trans12 = trans_t.reshape(12)                                      # SMEM

    out = pl.pallas_call(
        _warp_kernel,
        out_shape=jax.ShapeDtypeStruct((3, mp), jnp.float32),
        grid_spec=pltpu.PrefetchScalarGridSpec(
            num_scalar_prefetch=0,
            grid=(mp // tm,),
            in_specs=[
                pl.BlockSpec((3, tm), lambda i: (0, i)),                  # pts
                pl.BlockSpec(memory_space=pltpu.MemorySpace.SMEM),        # trans
                pl.BlockSpec((kp8, 3), lambda i: (0, 0)),                 # kpt[t]
                pl.BlockSpec((kp8, 3), lambda i: (0, 0)),                 # rad^2
                pl.BlockSpec((kp8, 3), lambda i: (0, 0)),                 # delta
            ],
            out_specs=pl.BlockSpec((3, tm), lambda i: (0, i)),
        ),
        compiler_params=pltpu.CompilerParams(
            dimension_semantics=("parallel",)),
    )(ptsT, trans12, kpt_p, radsq_p, delta_p)
    return out[:, :m].T.reshape(ori_shape)


# ---------------------- parameter init (mirrors __init__) ------------------- #
def smooth_scalar(x, iternum):
    for _ in range(iternum):
        x = jnp.concatenate([x[:1], x, x[-1:]], axis=0)
        x = (x[2:] + 2 * x[1:-1] + x[:-2]) / 4
    return x


def init_warp_kpt_params(key, *, t0=3, t_frames=4, n_pts=100, n_kpt=48):
    k1, k2, k3 = jax.random.split(key, 3)
    # synthetic stand-ins for the .npy / uv_gt inputs (no file loads)
    uv_gt_init = 0.1 * jax.random.normal(k1, (t0, n_pts, 4), jnp.float32)
    pt_tar = 0.1 * jax.random.normal(k2, (n_pts, 3), jnp.float32)   # canonical
    kpt_idx = jax.random.permutation(k3, n_pts)[:n_kpt]
    uv_gt_id2t = jnp.array([0, 1, 2, 2], dtype=jnp.int32)[:t_frames]

    pt3d = jnp.concatenate(
        [uv_gt_init[:, :, :3], jnp.ones_like(uv_gt_init[:, :, 3:4])], axis=-1)
    pt_tar_b = pt_tar[None]                                         # [1, N, 3]
    pt_src = pt3d                                                   # [T0, N, 4]
    pt_tar_tt = jnp.transpose(pt_tar_b, (0, 2, 1))                  # [1, 3, N]
    pt_src_tt = jnp.transpose(pt_src, (0, 2, 1))                    # [T0, 4, N]
    transform = pt_tar_tt @ pt_src @ jnp.linalg.inv(pt_src_tt @ pt_src)  # [T0,3,4]

    kpt3d = pt3d[:, kpt_idx]                                        # [T0, K, 4]
    kpt3d_remap = jnp.transpose(
        transform @ jnp.transpose(kpt3d, (0, 2, 1)), (0, 2, 1))     # [T0, K, 3]
    kpt3d_remap = kpt3d_remap[uv_gt_id2t]                           # [T, K, 3]
    kpt3d_canonical = pt_tar_b[:, kpt_idx]                          # [1, K, 3]
    transform = smooth_scalar(transform[uv_gt_id2t], 1)             # [T, 3, 4]
    kpt3d_bias_radius = jnp.ones_like(kpt3d_canonical) * 10.0       # [1, K, 3]

    return dict(transform=transform,
                kpt3d=kpt3d_remap,
                kpt3d_canonical=kpt3d_canonical,
                kpt3d_bias_radius=kpt3d_bias_radius)


# --------------------------- pure-JAX reference ------------------------------ #
def warp_kpt_forward_ref(pts, t_array, params):
    ori_shape = pts.shape
    p = jnp.asarray(pts, jnp.float32).reshape(-1, 3)
    t = int(jnp.reshape(t_array, (-1,))[0])
    trans = params["transform"][t]
    kpt = params["kpt3d"][t]
    radius = params["kpt3d_bias_radius"][0]
    canon = params["kpt3d_canonical"][0]

    ph = jnp.concatenate([p, jnp.ones_like(p[:, :1])], axis=-1)
    pw = ph @ trans.T                                               # [M, 3]
    dist = jnp.linalg.norm(kpt[None] - pw[:, None], axis=-1)        # [M, K]
    neg_vals, idx = lax.top_k(-dist, TOPK)
    dsel = -neg_vals                                                # [M, 32]
    dscaled = dsel[..., None] * radius[idx]                         # [M, 32, 3]
    w = jnp.maximum(jnp.exp(-dscaled ** 2), 1e-10)
    delta = (canon - kpt)[idx]                                      # [M, 32, 3]
    delta_pts = (delta * w).sum(-2) / w.sum(-2)
    return (pw + delta_pts).reshape(ori_shape)


if __name__ == "__main__":
    key = jax.random.PRNGKey(0)
    kp_key, pts_key = jax.random.split(key)
    params = init_warp_kpt_params(kp_key, t0=3, t_frames=4, n_pts=100, n_kpt=48)

    pts = 0.1 * jax.random.normal(pts_key, (2, 128, 3), jnp.float32)
    t = jnp.full((2, 128), 1, jnp.int32)   # single shared frame index, as in torch

    fwd = jax.jit(warp_kpt_forward, static_argnames=("tm",))
    out = jax.block_until_ready(fwd(pts, t, params))

    ref = warp_kpt_forward_ref(pts, t, params)
    assert out.shape == pts.shape
    assert bool(jnp.allclose(out, ref, rtol=1e-4, atol=2e-5)), (
        "max abs err", float(jnp.max(jnp.abs(out - ref))))
    print("KERNEL_OK")
</pallas_src>

<mosaic_0001>
module attributes {stable_mosaic.version = 11 : i64} {
  func.func @_warp_kernel(%arg0: i32, %arg1: memref<3x128xf32, #tpu.memory_space<vmem>>, %arg2: memref<12xf32, #tpu.memory_space<smem>>, %arg3: memref<48x3xf32, #tpu.memory_space<vmem>>, %arg4: memref<48x3xf32, #tpu.memory_space<vmem>>, %arg5: memref<48x3xf32, #tpu.memory_space<vmem>>, %arg6: memref<3x128xf32, #tpu.memory_space<vmem>>) attributes {dimension_semantics = [#tpu.dimension_semantics<parallel>], iteration_bounds = array<i64: 2>, scalar_prefetch = 0 : i64, scratch_operands = 0 : i64, tpu.core_type = #tpu.core_type<tc>, window_params = [{transform_indices = @transform_0, window_bounds = array<i64: 3, 128>}, {transform_indices = @transform_1, window_bounds = array<i64: 12>}, {pipeline_mode = #tpu.pipeline_mode<synchronous>, transform_indices = @transform_2, window_bounds = array<i64: 48, 3>}, {pipeline_mode = #tpu.pipeline_mode<synchronous>, transform_indices = @transform_3, window_bounds = array<i64: 48, 3>}, {pipeline_mode = #tpu.pipeline_mode<synchronous>, transform_indices = @transform_4, window_bounds = array<i64: 48, 3>}, {transform_indices = @transform_5, window_bounds = array<i64: 3, 128>}]} {
    %c0 = arith.constant 0 : index
    %c0_0 = arith.constant 0 : index
    %0 = vector.load %arg1[%c0, %c0_0] : memref<3x128xf32, #tpu.memory_space<vmem>>, vector<3x128xf32>
    %1 = vector.extract_strided_slice %0 {offsets = [0, 0], sizes = [1, 128], strides = [1, 1]} : vector<3x128xf32> to vector<1x128xf32>
    %2 = vector.extract_strided_slice %0 {offsets = [1, 0], sizes = [1, 128], strides = [1, 1]} : vector<3x128xf32> to vector<1x128xf32>
    %3 = vector.extract_strided_slice %0 {offsets = [2, 0], sizes = [1, 128], strides = [1, 1]} : vector<3x128xf32> to vector<1x128xf32>
    %c0_1 = arith.constant 0 : index
    %4 = memref.load %arg2[%c0_1] : memref<12xf32, #tpu.memory_space<smem>>
    %5 = vector.broadcast %4 : f32 to vector<1x128xf32>
    %6 = arith.mulf %5, %1 : vector<1x128xf32>
    %c1 = arith.constant 1 : index
    %7 = memref.load %arg2[%c1] : memref<12xf32, #tpu.memory_space<smem>>
    %8 = vector.broadcast %7 : f32 to vector<1x128xf32>
    %9 = arith.mulf %8, %2 : vector<1x128xf32>
    %10 = arith.addf %6, %9 : vector<1x128xf32>
    %c2 = arith.constant 2 : index
    %11 = memref.load %arg2[%c2] : memref<12xf32, #tpu.memory_space<smem>>
    %12 = vector.broadcast %11 : f32 to vector<1x128xf32>
    %13 = arith.mulf %12, %3 : vector<1x128xf32>
    %14 = arith.addf %10, %13 : vector<1x128xf32>
    %c3 = arith.constant 3 : index
    %15 = memref.load %arg2[%c3] : memref<12xf32, #tpu.memory_space<smem>>
    %16 = vector.broadcast %15 : f32 to vector<1x128xf32>
    %17 = arith.addf %14, %16 : vector<1x128xf32>
    %c4 = arith.constant 4 : index
    %18 = memref.load %arg2[%c4] : memref<12xf32, #tpu.memory_space<smem>>
    %19 = vector.broadcast %18 : f32 to vector<1x128xf32>
    %20 = arith.mulf %19, %1 : vector<1x128xf32>
    %c5 = arith.constant 5 : index
    %21 = memref.load %arg2[%c5] : memref<12xf32, #tpu.memory_space<smem>>
    %22 = vector.broadcast %21 : f32 to vector<1x128xf32>
    %23 = arith.mulf %22, %2 : vector<1x128xf32>
    %24 = arith.addf %20, %23 : vector<1x128xf32>
    %c6 = arith.constant 6 : index
    %25 = memref.load %arg2[%c6] : memref<12xf32, #tpu.memory_space<smem>>
    %26 = vector.broadcast %25 : f32 to vector<1x128xf32>
    %27 = arith.mulf %26, %3 : vector<1x128xf32>
    %28 = arith.addf %24, %27 : vector<1x128xf32>
    %c7 = arith.constant 7 : index
    %29 = memref.load %arg2[%c7] : memref<12xf32, #tpu.memory_space<smem>>
    %30 = vector.broadcast %29 : f32 to vector<1x128xf32>
    %31 = arith.addf %28, %30 : vector<1x128xf32>
    %c8 = arith.constant 8 : index
    %32 = memref.load %arg2[%c8] : memref<12xf32, #tpu.memory_space<smem>>
    %33 = vector.broadcast %32 : f32 to vector<1x128xf32>
    %34 = arith.mulf %33, %1 : vector<1x128xf32>
    %c9 = arith.constant 9 : index
    %35 = memref.load %arg2[%c9] : memref<12xf32, #tpu.memory_space<smem>>
    %36 = vector.broadcast %35 : f32 to vector<1x128xf32>
    %37 = arith.mulf %36, %2 : vector<1x128xf32>
    %38 = arith.addf %34, %37 : vector<1x128xf32>
    %c10 = arith.constant 10 : index
    %39 = memref.load %arg2[%c10] : memref<12xf32, #tpu.memory_space<smem>>
    %40 = vector.broadcast %39 : f32 to vector<1x128xf32>
    %41 = arith.mulf %40, %3 : vector<1x128xf32>
    %42 = arith.addf %38, %41 : vector<1x128xf32>
    %c11 = arith.constant 11 : index
    %43 = memref.load %arg2[%c11] : memref<12xf32, #tpu.memory_space<smem>>
    %44 = vector.broadcast %43 : f32 to vector<1x128xf32>
    %45 = arith.addf %42, %44 : vector<1x128xf32>
    %c0_2 = arith.constant 0 : index
    %c0_3 = arith.constant 0 : index
    %46 = vector.load %arg3[%c0_2, %c0_3] : memref<48x3xf32, #tpu.memory_space<vmem>>, vector<48x3xf32>
    %47 = vector.extract_strided_slice %46 {offsets = [0, 0], sizes = [48, 1], strides = [1, 1]} : vector<48x3xf32> to vector<48x1xf32>
    %48 = vector.broadcast %47 : vector<48x1xf32> to vector<48x128xf32>
    %49 = vector.broadcast %17 : vector<1x128xf32> to vector<48x128xf32>
    %50 = arith.subf %48, %49 : vector<48x128xf32>
    %51 = vector.extract_strided_slice %46 {offsets = [0, 1], sizes = [48, 1], strides = [1, 1]} : vector<48x3xf32> to vector<48x1xf32>
    %52 = vector.broadcast %51 : vector<48x1xf32> to vector<48x128xf32>
    %53 = vector.broadcast %31 : vector<1x128xf32> to vector<48x128xf32>
    %54 = arith.subf %52, %53 : vector<48x128xf32>
    %55 = vector.extract_strided_slice %46 {offsets = [0, 2], sizes = [48, 1], strides = [1, 1]} : vector<48x3xf32> to vector<48x1xf32>
    %56 = vector.broadcast %55 : vector<48x1xf32> to vector<48x128xf32>
    %57 = vector.broadcast %45 : vector<1x128xf32> to vector<48x128xf32>
    %58 = arith.subf %56, %57 : vector<48x128xf32>
    %59 = arith.mulf %50, %50 : vector<48x128xf32>
    %60 = arith.mulf %54, %54 : vector<48x128xf32>
    %61 = arith.addf %59, %60 : vector<48x128xf32>
    %62 = arith.mulf %58, %58 : vector<48x128xf32>
    %63 = arith.addf %61, %62 : vector<48x128xf32>
    %c0_4 = arith.constant 0 : index
    %c0_5 = arith.constant 0 : index
    %64 = vector.load %arg4[%c0_4, %c0_5] : memref<48x3xf32, #tpu.memory_space<vmem>>, vector<48x3xf32>
    %cst = arith.constant 0.000000e+00 : f32
    %65 = vector.broadcast %cst : f32 to vector<48x128xf32>
    %66 = arith.subf %65, %63 : vector<48x128xf32>
    %67 = vector.extract_strided_slice %64 {offsets = [0, 0], sizes = [48, 1], strides = [1, 1]} : vector<48x3xf32> to vector<48x1xf32>
    %68 = vector.broadcast %67 : vector<48x1xf32> to vector<48x128xf32>
    %69 = arith.mulf %66, %68 : vector<48x128xf32>
    %70 = math.exp %69 : vector<48x128xf32>
    %cst_6 = arith.constant 1.000000e-10 : f32
    %71 = vector.broadcast %cst_6 : f32 to vector<48x128xf32>
    %72 = arith.maximumf %70, %71 : vector<48x128xf32>
    %cst_7 = arith.constant 0.000000e+00 : f32
    %73 = vector.broadcast %cst_7 : f32 to vector<48x128xf32>
    %74 = arith.subf %73, %63 : vector<48x128xf32>
    %75 = vector.extract_strided_slice %64 {offsets = [0, 1], sizes = [48, 1], strides = [1, 1]} : vector<48x3xf32> to vector<48x1xf32>
    %76 = vector.broadcast %75 : vector<48x1xf32> to vector<48x128xf32>
    %77 = arith.mulf %74, %76 : vector<48x128xf32>
    %78 = math.exp %77 : vector<48x128xf32>
    %cst_8 = arith.constant 1.000000e-10 : f32
    %79 = vector.broadcast %cst_8 : f32 to vector<48x128xf32>
    %80 = arith.maximumf %78, %79 : vector<48x128xf32>
    %cst_9 = arith.constant 0.000000e+00 : f32
    %81 = vector.broadcast %cst_9 : f32 to vector<48x128xf32>
    %82 = arith.subf %81, %63 : vector<48x128xf32>
    %83 = vector.extract_strided_slice %64 {offsets = [0, 2], sizes = [48, 1], strides = [1, 1]} : vector<48x3xf32> to vector<48x1xf32>
    %84 = vector.broadcast %83 : vector<48x1xf32> to vector<48x128xf32>
    %85 = arith.mulf %82, %84 : vector<48x128xf32>
    %86 = math.exp %85 : vector<48x128xf32>
    %cst_10 = arith.constant 1.000000e-10 : f32
    %87 = vector.broadcast %cst_10 : f32 to vector<48x128xf32>
    %88 = arith.maximumf %86, %87 : vector<48x128xf32>
    %cst_11 = arith.constant dense<0xFF800000> : vector<128xf32>
    %89 = vector.multi_reduction <maximumf>, %63, %cst_11 [0] : vector<48x128xf32> to vector<128xf32>
    %90 = vector.shape_cast %89 : vector<128xf32> to vector<1x128xf32>
    %91 = vector.broadcast %90 : vector<1x128xf32> to vector<48x128xf32>
    %92 = arith.cmpf oeq, %63, %91 : vector<48x128xf32>
    %cst_12 = arith.constant -1.000000e+00 : f32
    %93 = vector.broadcast %cst_12 : f32 to vector<48x128xf32>
    %94 = arith.select %92, %93, %63 : vector<48x128xi1>, vector<48x128xf32>
    %cst_13 = arith.constant dense<0xFF800000> : vector<128xf32>
    %95 = vector.multi_reduction <maximumf>, %94, %cst_13 [0] : vector<48x128xf32> to vector<128xf32>
    %96 = vector.shape_cast %95 : vector<128xf32> to vector<1x128xf32>
    %97 = vector.broadcast %96 : vector<1x128xf32> to vector<48x128xf32>
    %98 = arith.cmpf oeq, %94, %97 : vector<48x128xf32>
    %cst_14 = arith.constant -1.000000e+00 : f32
    %99 = vector.broadcast %cst_14 : f32 to vector<48x128xf32>
    %100 = arith.select %98, %99, %94 : vector<48x128xi1>, vector<48x128xf32>
    %cst_15 = arith.constant dense<0xFF800000> : vector<128xf32>
    %101 = vector.multi_reduction <maximumf>, %100, %cst_15 [0] : vector<48x128xf32> to vector<128xf32>
    %102 = vector.shape_cast %101 : vector<128xf32> to vector<1x128xf32>
    %103 = vector.broadcast %102 : vector<1x128xf32> to vector<48x128xf32>
    %104 = arith.cmpf oeq, %100, %103 : vector<48x128xf32>
    %cst_16 = arith.constant -1.000000e+00 : f32
    %105 = vector.broadcast %cst_16 : f32 to vector<48x128xf32>
    %106 = arith.select %104, %105, %100 : vector<48x128xi1>, vector<48x128xf32>
    %cst_17 = arith.constant dense<0xFF800000> : vector<128xf32>
    %107 = vector.multi_reduction <maximumf>, %106, %cst_17 [0] : vector<48x128xf32> to vector<128xf32>
    %108 = vector.shape_cast %107 : vector<128xf32> to vector<1x128xf32>
    %109 = vector.broadcast %108 : vector<1x128xf32> to vector<48x128xf32>
    %110 = arith.cmpf oeq, %106, %109 : vector<48x128xf32>
    %cst_18 = arith.constant -1.000000e+00 : f32
    %111 = vector.broadcast %cst_18 : f32 to vector<48x128xf32>
    %112 = arith.select %110, %111, %106 : vector<48x128xi1>, vector<48x128xf32>
    %cst_19 = arith.constant dense<0xFF800000> : vector<128xf32>
    %113 = vector.multi_reduction <maximumf>, %112, %cst_19 [0] : vector<48x128xf32> to vector<128xf32>
    %114 = vector.shape_cast %113 : vector<128xf32> to vector<1x128xf32>
    %115 = vector.broadcast %114 : vector<1x128xf32> to vector<48x128xf32>
    %116 = arith.cmpf oeq, %112, %115 : vector<48x128xf32>
    %cst_20 = arith.constant -1.000000e+00 : f32
    %117 = vector.broadcast %cst_20 : f32 to vector<48x128xf32>
    %118 = arith.select %116, %117, %112 : vector<48x128xi1>, vector<48x128xf32>
    %cst_21 = arith.constant dense<0xFF800000> : vector<128xf32>
    %119 = vector.multi_reduction <maximumf>, %118, %cst_21 [0] : vector<48x128xf32> to vector<128xf32>
    %120 = vector.shape_cast %119 : vector<128xf32> to vector<1x128xf32>
    %121 = vector.broadcast %120 : vector<1x128xf32> to vector<48x128xf32>
    %122 = arith.cmpf oeq, %118, %121 : vector<48x128xf32>
    %cst_22 = arith.constant -1.000000e+00 : f32
    %123 = vector.broadcast %cst_22 : f32 to vector<48x128xf32>
    %124 = arith.select %122, %123, %118 : vector<48x128xi1>, vector<48x128xf32>
    %cst_23 = arith.constant dense<0xFF800000> : vector<128xf32>
    %125 = vector.multi_reduction <maximumf>, %124, %cst_23 [0] : vector<48x128xf32> to vector<128xf32>
    %126 = vector.shape_cast %125 : vector<128xf32> to vector<1x128xf32>
    %127 = vector.broadcast %126 : vector<1x128xf32> to vector<48x128xf32>
    %128 = arith.cmpf oeq, %124, %127 : vector<48x128xf32>
    %cst_24 = arith.constant -1.000000e+00 : f32
    %129 = vector.broadcast %cst_24 : f32 to vector<48x128xf32>
    %130 = arith.select %128, %129, %124 : vector<48x128xi1>, vector<48x128xf32>
    %cst_25 = arith.constant dense<0xFF800000> : vector<128xf32>
    %131 = vector.multi_reduction <maximumf>, %130, %cst_25 [0] : vector<48x128xf32> to vector<128xf32>
    %132 = vector.shape_cast %131 : vector<128xf32> to vector<1x128xf32>
    %133 = vector.broadcast %132 : vector<1x128xf32> to vector<48x128xf32>
    %134 = arith.cmpf oeq, %130, %133 : vector<48x128xf32>
    %cst_26 = arith.constant -1.000000e+00 : f32
    %135 = vector.broadcast %cst_26 : f32 to vector<48x128xf32>
    %136 = arith.select %134, %135, %130 : vector<48x128xi1>, vector<48x128xf32>
    %cst_27 = arith.constant dense<0xFF800000> : vector<128xf32>
    %137 = vector.multi_reduction <maximumf>, %136, %cst_27 [0] : vector<48x128xf32> to vector<128xf32>
    %138 = vector.shape_cast %137 : vector<128xf32> to vector<1x128xf32>
    %139 = vector.broadcast %138 : vector<1x128xf32> to vector<48x128xf32>
    %140 = arith.cmpf oeq, %136, %139 : vector<48x128xf32>
    %cst_28 = arith.constant -1.000000e+00 : f32
    %141 = vector.broadcast %cst_28 : f32 to vector<48x128xf32>
    %142 = arith.select %140, %141, %136 : vector<48x128xi1>, vector<48x128xf32>
    %cst_29 = arith.constant dense<0xFF800000> : vector<128xf32>
    %143 = vector.multi_reduction <maximumf>, %142, %cst_29 [0] : vector<48x128xf32> to vector<128xf32>
    %144 = vector.shape_cast %143 : vector<128xf32> to vector<1x128xf32>
    %145 = vector.broadcast %144 : vector<1x128xf32> to vector<48x128xf32>
    %146 = arith.cmpf oeq, %142, %145 : vector<48x128xf32>
    %cst_30 = arith.constant -1.000000e+00 : f32
    %147 = vector.broadcast %cst_30 : f32 to vector<48x128xf32>
    %148 = arith.select %146, %147, %142 : vector<48x128xi1>, vector<48x128xf32>
    %cst_31 = arith.constant dense<0xFF800000> : vector<128xf32>
    %149 = vector.multi_reduction <maximumf>, %148, %cst_31 [0] : vector<48x128xf32> to vector<128xf32>
    %150 = vector.shape_cast %149 : vector<128xf32> to vector<1x128xf32>
    %151 = vector.broadcast %150 : vector<1x128xf32> to vector<48x128xf32>
    %152 = arith.cmpf oeq, %148, %151 : vector<48x128xf32>
    %cst_32 = arith.constant -1.000000e+00 : f32
    %153 = vector.broadcast %cst_32 : f32 to vector<48x128xf32>
    %154 = arith.select %152, %153, %148 : vector<48x128xi1>, vector<48x128xf32>
    %cst_33 = arith.constant dense<0xFF800000> : vector<128xf32>
    %155 = vector.multi_reduction <maximumf>, %154, %cst_33 [0] : vector<48x128xf32> to vector<128xf32>
    %156 = vector.shape_cast %155 : vector<128xf32> to vector<1x128xf32>
    %157 = vector.broadcast %156 : vector<1x128xf32> to vector<48x128xf32>
    %158 = arith.cmpf oeq, %154, %157 : vector<48x128xf32>
    %cst_34 = arith.constant -1.000000e+00 : f32
    %159 = vector.broadcast %cst_34 : f32 to vector<48x128xf32>
    %160 = arith.select %158, %159, %154 : vector<48x128xi1>, vector<48x128xf32>
    %cst_35 = arith.constant dense<0xFF800000> : vector<128xf32>
    %161 = vector.multi_reduction <maximumf>, %160, %cst_35 [0] : vector<48x128xf32> to vector<128xf32>
    %162 = vector.shape_cast %161 : vector<128xf32> to vector<1x128xf32>
    %163 = vector.broadcast %162 : vector<1x128xf32> to vector<48x128xf32>
    %164 = arith.cmpf oeq, %160, %163 : vector<48x128xf32>
    %cst_36 = arith.constant -1.000000e+00 : f32
    %165 = vector.broadcast %cst_36 : f32 to vector<48x128xf32>
    %166 = arith.select %164, %165, %160 : vector<48x128xi1>, vector<48x128xf32>
    %cst_37 = arith.constant dense<0xFF800000> : vector<128xf32>
    %167 = vector.multi_reduction <maximumf>, %166, %cst_37 [0] : vector<48x128xf32> to vector<128xf32>
    %168 = vector.shape_cast %167 : vector<128xf32> to vector<1x128xf32>
    %169 = vector.broadcast %168 : vector<1x128xf32> to vector<48x128xf32>
    %170 = arith.cmpf oeq, %166, %169 : vector<48x128xf32>
    %cst_38 = arith.constant -1.000000e+00 : f32
    %171 = vector.broadcast %cst_38 : f32 to vector<48x128xf32>
    %172 = arith.select %170, %171, %166 : vector<48x128xi1>, vector<48x128xf32>
    %cst_39 = arith.constant dense<0xFF800000> : vector<128xf32>
    %173 = vector.multi_reduction <maximumf>, %172, %cst_39 [0] : vector<48x128xf32> to vector<128xf32>
    %174 = vector.shape_cast %173 : vector<128xf32> to vector<1x128xf32>
    %175 = vector.broadcast %174 : vector<1x128xf32> to vector<48x128xf32>
    %176 = arith.cmpf oeq, %172, %175 : vector<48x128xf32>
    %cst_40 = arith.constant -1.000000e+00 : f32
    %177 = vector.broadcast %cst_40 : f32 to vector<48x128xf32>
    %178 = arith.select %176, %177, %172 : vector<48x128xi1>, vector<48x128xf32>
    %cst_41 = arith.constant dense<0xFF800000> : vector<128xf32>
    %179 = vector.multi_reduction <maximumf>, %178, %cst_41 [0] : vector<48x128xf32> to vector<128xf32>
    %180 = vector.shape_cast %179 : vector<128xf32> to vector<1x128xf32>
    %181 = vector.broadcast %180 : vector<1x128xf32> to vector<48x128xf32>
    %182 = arith.cmpf oeq, %178, %181 : vector<48x128xf32>
    %cst_42 = arith.constant -1.000000e+00 : f32
    %183 = vector.broadcast %cst_42 : f32 to vector<48x128xf32>
    %184 = arith.select %182, %183, %178 : vector<48x128xi1>, vector<48x128xf32>
    %cst_43 = arith.constant 0.000000e+00 : f32
    %185 = vector.broadcast %cst_43 : f32 to vector<48x128xf32>
    %186 = arith.cmpf oge, %184, %185 : vector<48x128xf32>
    %cst_44 = arith.constant 0.000000e+00 : f32
    %187 = vector.broadcast %cst_44 : f32 to vector<48x128xf32>
    %188 = arith.select %186, %72, %187 : vector<48x128xi1>, vector<48x128xf32>
    %cst_45 = arith.constant 0.000000e+00 : f32
    %189 = vector.broadcast %cst_45 : f32 to vector<48x128xf32>
    %190 = arith.select %186, %80, %189 : vector<48x128xi1>, vector<48x128xf32>
    %cst_46 = arith.constant 0.000000e+00 : f32
    %191 = vector.broadcast %cst_46 : f32 to vector<48x128xf32>
    %192 = arith.select %186, %88, %191 : vector<48x128xi1>, vector<48x128xf32>
    %c0_47 = arith.constant 0 : index
    %c0_48 = arith.constant 0 : index
    %193 = vector.load %arg5[%c0_47, %c0_48] : memref<48x3xf32, #tpu.memory_space<vmem>>, vector<48x3xf32>
    %194 = vector.extract_strided_slice %193 {offsets = [0, 0], sizes = [48, 1], strides = [1, 1]} : vector<48x3xf32> to vector<48x1xf32>
    %195 = vector.broadcast %194 : vector<48x1xf32> to vector<48x128xf32>
    %196 = arith.mulf %188, %195 : vector<48x128xf32>
    %cst_49 = arith.constant dense<0.000000e+00> : vector<128xf32>
    %197 = vector.multi_reduction <add>, %196, %cst_49 [0] : vector<48x128xf32> to vector<128xf32>
    %198 = vector.shape_cast %197 : vector<128xf32> to vector<1x128xf32>
    %cst_50 = arith.constant dense<0.000000e+00> : vector<128xf32>
    %199 = vector.multi_reduction <add>, %188, %cst_50 [0] : vector<48x128xf32> to vector<128xf32>
    %200 = vector.shape_cast %199 : vector<128xf32> to vector<1x128xf32>
    %201 = arith.divf %198, %200 : vector<1x128xf32>
    %202 = arith.addf %17, %201 : vector<1x128xf32>
    %c0_51 = arith.constant 0 : index
    %c0_52 = arith.constant 0 : index
    %203 = vector.load %arg6[%c0_51, %c0_52] : memref<3x128xf32, #tpu.memory_space<vmem>>, vector<1x128xf32>
    tpu.vector_store %arg6[%c0_51, %c0_52], %202 {strides = array<i32>} : memref<3x128xf32, #tpu.memory_space<vmem>>, vector<1x128xf32>,
    %204 = vector.extract_strided_slice %193 {offsets = [0, 1], sizes = [48, 1], strides = [1, 1]} : vector<48x3xf32> to vector<48x1xf32>
    %205 = vector.broadcast %204 : vector<48x1xf32> to vector<48x128xf32>
    %206 = arith.mulf %190, %205 : vector<48x128xf32>
    %cst_53 = arith.constant dense<0.000000e+00> : vector<128xf32>
    %207 = vector.multi_reduction <add>, %206, %cst_53 [0] : vector<48x128xf32> to vector<128xf32>
    %208 = vector.shape_cast %207 : vector<128xf32> to vector<1x128xf32>
    %cst_54 = arith.constant dense<0.000000e+00> : vector<128xf32>
    %209 = vector.multi_reduction <add>, %190, %cst_54 [0] : vector<48x128xf32> to vector<128xf32>
    %210 = vector.shape_cast %209 : vector<128xf32> to vector<1x128xf32>
    %211 = arith.divf %208, %210 : vector<1x128xf32>
    %212 = arith.addf %31, %211 : vector<1x128xf32>
    %c1_55 = arith.constant 1 : index
    %c0_56 = arith.constant 0 : index
    %213 = vector.load %arg6[%c1_55, %c0_56] : memref<3x128xf32, #tpu.memory_space<vmem>>, vector<1x128xf32>
    tpu.vector_store %arg6[%c1_55, %c0_56], %212 {strides = array<i32>} : memref<3x128xf32, #tpu.memory_space<vmem>>, vector<1x128xf32>,
    %214 = vector.extract_strided_slice %193 {offsets = [0, 2], sizes = [48, 1], strides = [1, 1]} : vector<48x3xf32> to vector<48x1xf32>
    %215 = vector.broadcast %214 : vector<48x1xf32> to vector<48x128xf32>
    %216 = arith.mulf %192, %215 : vector<48x128xf32>
    %cst_57 = arith.constant dense<0.000000e+00> : vector<128xf32>
    %217 = vector.multi_reduction <add>, %216, %cst_57 [0] : vector<48x128xf32> to vector<128xf32>
    %218 = vector.shape_cast %217 : vector<128xf32> to vector<1x128xf32>
    %cst_58 = arith.constant dense<0.000000e+00> : vector<128xf32>
    %219 = vector.multi_reduction <add>, %192, %cst_58 [0] : vector<48x128xf32> to vector<128xf32>
    %220 = vector.shape_cast %219 : vector<128xf32> to vector<1x128xf32>
    %221 = arith.divf %218, %220 : vector<1x128xf32>
    %222 = arith.addf %45, %221 : vector<1x128xf32>
    %c2_59 = arith.constant 2 : index
    %c0_60 = arith.constant 0 : index
    %223 = vector.load %arg6[%c2_59, %c0_60] : memref<3x128xf32, #tpu.memory_space<vmem>>, vector<1x128xf32>
    tpu.vector_store %arg6[%c2_59, %c0_60], %222 {strides = array<i32>} : memref<3x128xf32, #tpu.memory_space<vmem>>, vector<1x128xf32>,
    return
  }
  func.func @transform_0(%arg0: i32) -> (i32, i32) {
    %c0_i32 = arith.constant 0 : i32
    %c0_i32_0 = arith.constant 0 : i32
    return %c0_i32, %arg0 : i32, i32
  }
  func.func @transform_1(%arg0: i32) -> i32 {
    %c0_i32 = arith.constant 0 : i32
    %c0_i32_0 = arith.constant 0 : i32
    return %c0_i32 : i32
  }
  func.func @transform_2(%arg0: i32) -> (i32, i32) {
    %c0_i32 = arith.constant 0 : i32
    %c0_i32_0 = arith.constant 0 : i32
    %c0_i32_1 = arith.constant 0 : i32
    return %c0_i32, %c0_i32_0 : i32, i32
  }
  func.func @transform_3(%arg0: i32) -> (i32, i32) {
    %c0_i32 = arith.constant 0 : i32
    %c0_i32_0 = arith.constant 0 : i32
    %c0_i32_1 = arith.constant 0 : i32
    return %c0_i32, %c0_i32_0 : i32, i32
  }
  func.func @transform_4(%arg0: i32) -> (i32, i32) {
    %c0_i32 = arith.constant 0 : i32
    %c0_i32_0 = arith.constant 0 : i32
    %c0_i32_1 = arith.constant 0 : i32
    return %c0_i32, %c0_i32_0 : i32, i32
  }
  func.func @transform_5(%arg0: i32) -> (i32, i32) {
    %c0_i32 = arith.constant 0 : i32
    %c0_i32_0 = arith.constant 0 : i32
    return %c0_i32, %arg0 : i32, i32
  }
}

</mosaic_0001>

<llo_original>
// kernel: squeeze.9
$region0: #{squeeze.9}
  %s0 = inlined_call_operand.vmem [shape: f32[3,4], index: 0, kind: input, shape index: {}]
  %s1 = inlined_call_operand.vmem [shape: f32[12], index: 1, kind: output, shape index: {}]
  $region1: #{squeeze.9} parent=0
    #allocation0 [shape = 'u8[4096]{0}', space=vmem, size = 0x1000, scoped, tag = 'scoped mem for output reshape']
    #allocation1 [shape = 'u8[4096]{0}', space=vmem, size = 0x1000, scoped, tag = 'scoped mem for input reshape']
    %s3 = sshllo.u32 0, 4
    %v4 = vld [vmem:[%s0] sm:%s3]
    %5 = vst [vmem:[#allocation1] sm:%s3] %v4
    %v6 = vld [vmem:[#allocation1] sm:$0x1]
    %vm7 = vcmask 31744
    %8 = vst.msk [vmem:[#allocation0] sm:$0x1] %vm7, %v6
    %s9 = scalar_lea.vmem [#allocation1], 2
    %v10 = vld [vmem:[%s9] sm:$0x1]
    %11 = vrot.lane.b32.xlu0 %v10, 8
    %v12 = vpop.permute.xlu0 %11
    %vm13 = vcmask 97344
    %14 = vst.msk [vmem:[#allocation0] sm:$0x1] %vm13, %v12
    %s15 = scalar_lea.vmem [#allocation1], 1
    %v16 = vld [vmem:[%s15] sm:$0x1]
    %17 = vrot.lane.b32.xlu0 %v16, 4
    %v18 = vpop.permute.xlu0 %17
    %vm19 = vcmask 64544
    %20 = vst.msk [vmem:[#allocation0] sm:$0x1] %vm19, %v18
    %s22 = sshllo.u32 0, 1
    %v24 = vld [vmem:[#allocation0] sm:%s22]
    %s25 = sshllo.u32 0, 1
    %26 = vst [vmem:[%s1] sm:%s25] %v24

// kernel: mul.0
$region0: #{mul.0}
  #allocation0 [shape = 's32[1]{0}', space=sflag, size = 0x4, scoped, tag = 'scoped memory for mul.0']
  %s0 = inlined_call_operand.vmem [shape: f32[1,48,3], index: 0, kind: input, shape index: {}, may-alias: {0,1}]
  %s1 = inlined_call_operand.vmem [shape: f32[1,48,3], index: 1, kind: input, shape index: {}, may-alias: {0,1}]
  %s2 = inlined_call_operand.vmem [shape: f32[1,48,3], index: 2, kind: output, shape index: {}]
  %v3 = vld [vmem:[%s0] sm:$0x1]
  %v4 = vld [vmem:[%s1] sm:$0x1]
  %5 = xla_tuple %v3, %v4
  %6 = xla_tuple %5
  %v7 = vmul.f32 %v3, %v4
  %8 = xla_tuple %v7
  %9 = vst [vmem:[%s2] sm:$0x1] %v7
  %s10 = scalar_lea.vmem %s0, 1
  %v11 = vld [vmem:[%s10] sm:$0x1]
  %s12 = scalar_lea.vmem %s1, 1
  %v13 = vld [vmem:[%s12] sm:$0x1]
  %14 = xla_tuple %v11, %v13
  %15 = xla_tuple %14
  %v16 = vmul.f32 %v11, %v13
  %17 = xla_tuple %v16
  %s18 = scalar_lea.vmem %s2, 1
  %19 = vst [vmem:[%s18] sm:$0x1] %v16
  %s20 = scalar_lea.vmem %s0, 2
  %v21 = vld [vmem:[%s20] sm:$0x1]
  %s22 = scalar_lea.vmem %s1, 2
  %v23 = vld [vmem:[%s22] sm:$0x1]
  %24 = xla_tuple %v21, %v23
  %25 = xla_tuple %24
  %v26 = vmul.f32 %v21, %v23
  %27 = xla_tuple %v26
  %s28 = scalar_lea.vmem %s2, 2
  %29 = vst [vmem:[%s28] sm:$0x1] %v26

// kernel: warp_kpt_forward.1
$region0: #{warp_kpt_forward.1}
  #allocation0 [shape = 'u32[]', space=smem, size = 0x4, offset = 0x4, fixed_abs, tag = 'smem constant byte address 0x4 - core index']
  #allocation1 [shape = 'u32[144,128]{1,0:T(1,128)}', space=vmem, size = 0x12000, scoped, tag = 'internal scratch']
  %s0 = inlined_call_operand.vmem [shape: f32[3,256], index: 0, kind: input, shape index: {}]
  %s1 = inlined_call_operand.vmem [shape: f32[12], index: 1, kind: input, shape index: {}]
  %s2 = inlined_call_operand.vmem [shape: f32[48,3], index: 2, kind: input, shape index: {}]
  %s3 = inlined_call_operand.vmem [shape: f32[48,3], index: 3, kind: input, shape index: {}]
  %s4 = inlined_call_operand.vmem [shape: f32[48,3], index: 4, kind: input, shape index: {}]
  %s5 = inlined_call_operand.vmem [shape: f32[3,256], index: 5, kind: output, shape index: {}]
  %s6 = sld [smem:[#allocation0]]
  $region57: #{warp_kpt_forward.1} parent=0
    _
  %s8 = ssub.s32 1, %s6
  %s9 = scalar_select 0, %s8, %s6
  $region1: #{warp_kpt_forward.1} parent=0
    #allocation2 [shape = 'u8[512]{0}', space=smem, size = 0x200, scoped, tag = 'input window, operand 1, single buffered']
    #allocation3 [shape = 's32[2]{0}', space=sflag, size = 0x8, scoped, tag = 'scoped memory for warp_kpt_forward.1']
    %10 = vsyncpa [#allocation3], 0
    loop: start=0, step=1, limit=4
    $region2: #{warp_kpt_forward.1} parent=1 // loop_pre_header
      _
    $region3: #{warp_kpt_forward.1} parent=1 // loop_header
      %s12 = sphi 0, %s16
      %p13 = scmp.ge.s32.totalorder %s12, 4
      %s22 = sphi 0, %s24
      %s25 = sphi 0, %s22
      %s26 = sphi 0, %s25
      %s42 = sphi 0, %s26
      %s46 = sphi 0, %s46
      %s48 = sphi 0, %s46
      %s49 = sphi 0, %s48
      %s63 = sphi 0, %s49
      %s67 = sphi 0, %s67
      %s69 = sphi 0, %s67
      %s70 = sphi 0, %s69
      %s84 = sphi 0, %s70
      %s88 = sphi 0, %s88
      %s90 = sphi 0, %s88
      %s91 = sphi 0, %s90
      %s105 = sphi 0, %s91
      %s109 = sphi 0, %s109
      %s111 = sphi 0, %s109
      %s112 = sphi 0, %s111
      %s126 = sphi 0, %s112
      %s132 = sphi 0, %s134
      %s135 = sphi 0, %s132
      %s136 = sphi 0, %s135
      %s152 = sphi 0, %s136
    $region4: #{warp_kpt_forward.1} parent=1 // loop_header_branch
      %15 = sbr.rel (%p13) target = $region8
    $region5: #{warp_kpt_forward.1} parent=1 // loop_body
      %s17 = ssub.s32 %s12, 1
      %s18 = ssub.s32 %s12, 2
      %s19 = sadd.s32 %s12, 1
      %s20 = ssub.s32 %s12, %s19
      %p21 = scmp.eq.s32.totalorder %s20, 0
      %s23 = sadd.s32 %s22, 1
      %s24 = scalar_select %p21, %s22, %s23
      %p27 = pneg %p21
      %p28 = scmp.eq.s32.totalorder %s12, 1
      %p29 = por %p27, %p28
      %p30 = scmp.ne.s32.totalorder %s22, %s25
      %p31 = scmp.eq.s32.totalorder %s12, 0
      %p32 = por %p30, %p31
      %p33 = scmp.ne.s32.totalorder %s22, %s25
      %p34 = scmp.eq.s32.totalorder %s17, 1
      %p35 = por %p33, %p34
      %p36 = scmp.ne.s32.totalorder %s25, %s26
      %p37 = scmp.eq.s32.totalorder %s17, 0
      %p38 = por %p36, %p37
      %p39 = scmp.ne.s32.totalorder %s25, %s26
      %p40 = scmp.eq.s32.totalorder %s18, 1
      %p41 = por %p39, %p40
      %p43 = scmp.ne.s32.totalorder %s26, %s42
      %p44 = scmp.eq.s32.totalorder %s18, 0
      %p45 = por %p43, %p44
      %s47 = sadd.s32 %s46, 1
      %p50 = scmp.eq.s32.totalorder %s12, 1
      %p51 = scmp.ne.s32.totalorder %s46, %s48
      %p52 = scmp.eq.s32.totalorder %s12, 0
      %p53 = por %p51, %p52
      %p54 = scmp.ne.s32.totalorder %s46, %s48
      %p55 = scmp.eq.s32.totalorder %s17, 1
      %p56 = por %p54, %p55
      %p57 = scmp.ne.s32.totalorder %s48, %s49
      %p58 = scmp.eq.s32.totalorder %s17, 0
      %p59 = por %p57, %p58
      %p60 = scmp.ne.s32.totalorder %s48, %s49
      %p61 = scmp.eq.s32.totalorder %s18, 1
      %p62 = por %p60, %p61
      %p64 = scmp.ne.s32.totalorder %s49, %s63
      %p65 = scmp.eq.s32.totalorder %s18, 0
      %p66 = por %p64, %p65
      %s68 = sadd.s32 %s67, 1
      %p71 = scmp.eq.s32.totalorder %s12, 1
      %p72 = scmp.ne.s32.totalorder %s67, %s69
      %p73 = scmp.eq.s32.totalorder %s12, 0
      %p74 = por %p72, %p73
      %p75 = scmp.ne.s32.totalorder %s67, %s69
      %p76 = scmp.eq.s32.totalorder %s17, 1
      %p77 = por %p75, %p76
      %p78 = scmp.ne.s32.totalorder %s69, %s70
      %p79 = scmp.eq.s32.totalorder %s17, 0
      %p80 = por %p78, %p79
      %p81 = scmp.ne.s32.totalorder %s69, %s70
      %p82 = scmp.eq.s32.totalorder %s18, 1
      %p83 = por %p81, %p82
      %p85 = scmp.ne.s32.totalorder %s70, %s84
      %p86 = scmp.eq.s32.totalorder %s18, 0
      %p87 = por %p85, %p86
      %s89 = sadd.s32 %s88, 1
      %p92 = scmp.eq.s32.totalorder %s12, 1
      %p93 = scmp.ne.s32.totalorder %s88, %s90
      %p94 = scmp.eq.s32.totalorder %s12, 0
      %p95 = por %p93, %p94
      %p96 = scmp.ne.s32.totalorder %s88, %s90
      %p97 = scmp.eq.s32.totalorder %s17, 1
      %p98 = por %p96, %p97
      %p99 = scmp.ne.s32.totalorder %s90, %s91
      %p100 = scmp.eq.s32.totalorder %s17, 0
      %p101 = por %p99, %p100
      %p102 = scmp.ne.s32.totalorder %s90, %s91
      %p103 = scmp.eq.s32.totalorder %s18, 1
      %p104 = por %p102, %p103
      %p106 = scmp.ne.s32.totalorder %s91, %s105
      %p107 = scmp.eq.s32.totalorder %s18, 0
      %p108 = por %p106, %p107
      %s110 = sadd.s32 %s109, 1
      %p113 = scmp.eq.s32.totalorder %s12, 1
      %p114 = scmp.ne.s32.totalorder %s109, %s111
      %p115 = scmp.eq.s32.totalorder %s12, 0
      %p116 = por %p114, %p115
      %p117 = scmp.ne.s32.totalorder %s109, %s111
      %p118 = scmp.eq.s32.totalorder %s17, 1
      %p119 = por %p117, %p118
      %p120 = scmp.ne.s32.totalorder %s111, %s112
      %p121 = scmp.eq.s32.totalorder %s17, 0
      %p122 = por %p120, %p121
      %p123 = scmp.ne.s32.totalorder %s111, %s112
      %p124 = scmp.eq.s32.totalorder %s18, 1
      %p125 = por %p123, %p124
      %p127 = scmp.ne.s32.totalorder %s112, %s126
      %p128 = scmp.eq.s32.totalorder %s18, 0
      %p129 = por %p127, %p128
      %s130 = ssub.s32 %s12, %s19
      %p131 = scmp.eq.s32.totalorder %s130, 0
      %s133 = sadd.s32 %s132, 1
      %s134 = scalar_select %p131, %s132, %s133
      %p137 = pneg %p131
      %p138 = scmp.eq.s32.totalorder %s12, 1
      %p139 = por %p137, %p138
      %p140 = scmp.ne.s32.totalorder %s132, %s135
      %p141 = scmp.eq.s32.totalorder %s12, 0
      %p142 = por %p140, %p141
      %p143 = scmp.ne.s32.totalorder %s132, %s135
      %p144 = scmp.eq.s32.totalorder %s17, 1
      %p145 = por %p143, %p144
      %p146 = scmp.ne.s32.totalorder %s135, %s136
      %p147 = scmp.eq.s32.totalorder %s17, 0
      %p148 = por %p146, %p147
      %p149 = scmp.ne.s32.totalorder %s135, %s136
      %p150 = scmp.eq.s32.totalorder %s18, 1
      %p151 = por %p149, %p150
      %p153 = scmp.ne.s32.totalorder %s136, %s152
      %p154 = scmp.eq.s32.totalorder %s18, 0
      %p155 = por %p153, %p154
      %p156 = scmp.le.s32.totalorder 1, %s12
      %p157 = scmp.lt.s32.totalorder %s12, 3
      %p158 = pnand %p156, %p157
      %p159 = pneg %p158
      // Predicated region
      $region9: #{warp_kpt_forward.1} parent=5 // pred_check
        _
      $region10: #{warp_kpt_forward.1} parent=5 // pred_check_branch
        %161 = sbr.rel (%p158) target = $region12
      $region11: #{warp_kpt_forward.1} parent=5 // pred_region
        %s162 = ssub.s32 %s12, 1
        // Predicated region
        $region13: #{warp_kpt_forward.1} parent=11 // pred_check
          %p163 = pneg %p59
        $region14: #{warp_kpt_forward.1} parent=11 // pred_check_branch
          %165 = sbr.rel (%p163) target = $region16
        $region15: #{warp_kpt_forward.1} parent=11 // pred_region
          %s167 = ssub.s32 16, 16
          %168 = vsyncadd [#allocation3], %s167
          %s170 = sshll.u32 %s1, 4
          %s171 = int_to_ptr.vmem [resolvable:$true] %s170
          %173 = dma.vmem_to_smem %s171, 16, [#allocation2], [#allocation3]
        $region16: #{warp_kpt_forward.1} parent=11 // pred_fallthru
          _
        // Predicated region
        $region17: #{warp_kpt_forward.1} parent=11 // pred_check
          %p174 = pneg %p80
        $region18: #{warp_kpt_forward.1} parent=11 // pred_check_branch
          %176 = sbr.rel (%p174) target = $region20
        $region19: #{warp_kpt_forward.1} parent=11 // pred_region
          _
        $region20: #{warp_kpt_forward.1} parent=11 // pred_fallthru
          _
        // Predicated region
        $region21: #{warp_kpt_forward.1} parent=11 // pred_check
          %p177 = pneg %p101
        $region22: #{warp_kpt_forward.1} parent=11 // pred_check_branch
          %179 = sbr.rel (%p177) target = $region24
        $region23: #{warp_kpt_forward.1} parent=11 // pred_region
          _
        $region24: #{warp_kpt_forward.1} parent=11 // pred_fallthru
          _
        // Predicated region
        $region25: #{warp_kpt_forward.1} parent=11 // pred_check
          %p180 = pneg %p122
        $region26: #{warp_kpt_forward.1} parent=11 // pred_check_branch
          %182 = sbr.rel (%p180) target = $region28
        $region27: #{warp_kpt_forward.1} parent=11 // pred_region
          _
        $region28: #{warp_kpt_forward.1} parent=11 // pred_fallthru
          _
      $region12: #{warp_kpt_forward.1} parent=5 // pred_fallthru
        _
      %p183 = scmp.lt.s32.totalorder %s12, 2
      // Predicated region
      $region29: #{warp_kpt_forward.1} parent=5 // pred_check
        %p184 = pneg %p183
      $region30: #{warp_kpt_forward.1} parent=5 // pred_check_branch
        %186 = sbr.rel (%p184) target = $region32
      $region31: #{warp_kpt_forward.1} parent=5 // pred_region
        // Predicated region
        $region33: #{warp_kpt_forward.1} parent=31 // pred_check
          %p187 = pneg %p32
        $region34: #{warp_kpt_forward.1} parent=31 // pred_check_branch
          %189 = sbr.rel (%p187) target = $region36
        $region35: #{warp_kpt_forward.1} parent=31 // pred_region
          %p190 = scmp.lt.s32.totalorder %s12, 1
          %s191 = scalar_select %p190, %s12, 1
          %s192 = smul.addr %s191, 4
          %s193 = scalar_lea.vmem %s0, %s192
        $region36: #{warp_kpt_forward.1} parent=31 // pred_fallthru
          _
      $region32: #{warp_kpt_forward.1} parent=5 // pred_fallthru
        _
      %p194 = scmp.le.s32.totalorder 1, %s12
      %p195 = scmp.lt.s32.totalorder %s12, 3
      %p196 = pnand %p194, %p195
      %p197 = pneg %p196
      // Predicated region
      $region37: #{warp_kpt_forward.1} parent=5 // pred_check
        _
      $region38: #{warp_kpt_forward.1} parent=5 // pred_check_branch
        %199 = sbr.rel (%p196) target = $region40
      $region39: #{warp_kpt_forward.1} parent=5 // pred_region
        %s200 = ssub.s32 %s12, 1
        // Predicated region
        $region41: #{warp_kpt_forward.1} parent=39 // pred_check
          %p201 = pneg %p59
        $region42: #{warp_kpt_forward.1} parent=39 // pred_check_branch
          %203 = sbr.rel (%p201) target = $region44
        $region43: #{warp_kpt_forward.1} parent=39 // pred_region
          %204 = dma.done [#allocation3], 16
        $region44: #{warp_kpt_forward.1} parent=39 // pred_fallthru
          _
        %205 = sfence
        %p206 = scmp.lt.s32.totalorder %s17, 1
        %s207 = scalar_select %p206, %s17, 1
        %s208 = smul.addr %s207, 4
        %s209 = scalar_lea.vmem %s0, %s208
        %p210 = pneg %p38
        %p211 = pneg %p35
        %p212 = pneg %p59
        %p213 = pneg %p56
        %p214 = pneg %p80
        %p215 = pneg %p77
        %p216 = pneg %p101
        %p217 = pneg %p98
        %p218 = pneg %p122
        %p219 = pneg %p119
        %p220 = pneg %p148
        %p221 = pneg %p145
        %p222 = scmp.lt.s32.totalorder %s17, 1
        %s223 = scalar_select %p222, %s17, 1
        %s224 = smul.addr %s223, 4
        %s225 = scalar_lea.vmem %s5, %s224
        %p226 = scmp.lt.s32.totalorder %s17, 1
        %s227 = scalar_select %p226, %s17, 1
        %s228 = smul.addr %s227, 4
        %s229 = scalar_lea.vmem %s0, %s228
        %p230 = scmp.lt.s32.totalorder %s17, 1
        %s231 = scalar_select %p230, %s17, 1
        %s232 = smul.addr %s231, 4
        %s233 = scalar_lea.vmem %s5, %s232
        %v234 = vld [vmem:[%s229] sm:$0x7]
        %s235 = sld [smem:[#allocation2]]
        %v236 = vstv %s235
        %v237 = vmul.f32 %v236, %v234
        %s238 = sld [smem:[#allocation2 + $0x1]]
        %v239 = vstv %s238
        %v240 = vmul.f32 %v239, %v234
        %v242 = vrot.slane %v240, 1
        %v244 = vadd.f32 %v237, %v242
        %s245 = sld [smem:[#allocation2 + $0x2]]
        %v246 = vstv %s245
        %v247 = vmul.f32 %v246, %v234
        %v249 = vrot.slane %v247, 2
        %v251 = vadd.f32 %v244, %v249
        %s252 = sld [smem:[#allocation2 + $0x3]]
        %v253 = vstv %s252
        %v254 = vadd.f32 %v251, %v253
        %s255 = sld [smem:[#allocation2 + $0x4]]
        %v256 = vstv %s255
        %v257 = vmul.f32 %v256, %v234
        %s258 = sld [smem:[#allocation2 + $0x5]]
        %v259 = vstv %s258
        %v260 = vmul.f32 %v259, %v234
        %v262 = vrot.slane %v260, 1
        %v264 = vadd.f32 %v257, %v262
        %s265 = sld [smem:[#allocation2 + $0x6]]
        %v266 = vstv %s265
        %v267 = vmul.f32 %v266, %v234
        %v269 = vrot.slane %v267, 2
        %v271 = vadd.f32 %v264, %v269
        %s272 = sld [smem:[#allocation2 + $0x7]]
        %v273 = vstv %s272
        %v274 = vadd.f32 %v271, %v273
        %s275 = sld [smem:[#allocation2 + $0x8]]
        %v276 = vstv %s275
        %v277 = vmul.f32 %v276, %v234
        %s278 = sld [smem:[#allocation2 + $0x9]]
        %v279 = vstv %s278
        %v280 = vmul.f32 %v279, %v234
        %v282 = vrot.slane %v280, 1
        %v284 = vadd.f32 %v277, %v282
        %s285 = sld [smem:[#allocation2 + $0xa]]
        %v286 = vstv %s285
        %v287 = vmul.f32 %v286, %v234
        %v289 = vrot.slane %v287, 2
        %v291 = vadd.f32 %v284, %v289
        %s292 = sld [smem:[#allocation2 + $0xb]]
        %v293 = vstv %s292
        %v294 = vadd.f32 %v291, %v293
        %v295 = vld [vmem:[%s2] sm:$0xff]
        %v296 = vld [vmem:[%s2 + $0x8] sm:$0xff]
        %v297 = vld [vmem:[%s2 + $0x10] sm:$0xff]
        %v298 = vld [vmem:[%s2 + $0x18] sm:$0xff]
        %v299 = vld [vmem:[%s2 + $0x20] sm:$0xff]
        %v300 = vld [vmem:[%s2 + $0x28] sm:$0xff]
        %302 = vset.pattern.permute.xlu0 0
        %303 = vperm.xlu0 %302, %v295
        %v304 = vpop.permute.xlu0 %303
        %307 = vset.pattern.permute.xlu0 0
        %308 = vperm.xlu0 %307, %v296
        %v309 = vpop.permute.xlu0 %308
        %312 = vset.pattern.permute.xlu0 0
        %313 = vperm.xlu0 %312, %v297
        %v314 = vpop.permute.xlu0 %313
        %317 = vset.pattern.permute.xlu0 0
        %318 = vperm.xlu0 %317, %v298
        %v319 = vpop.permute.xlu0 %318
        %322 = vset.pattern.permute.xlu0 0
        %323 = vperm.xlu0 %322, %v299
        %v324 = vpop.permute.xlu0 %323
        %327 = vset.pattern.permute.xlu0 0
        %328 = vperm.xlu0 %327, %v300
        %v329 = vpop.permute.xlu0 %328
        %v331 = vlaneseq
        %v332 = vshrl.u32 %v331, 7
        %v333 = vsub.s32 0, %v332
        %v334 = vrot.slane %v254, %v333
        %v335 = vsub.f32 %v304, %v334
        %v336 = vsub.f32 %v309, %v334
        %v337 = vsub.f32 %v314, %v334
        %v338 = vsub.f32 %v319, %v334
        %v339 = vsub.f32 %v324, %v334
        %v340 = vsub.f32 %v329, %v334
        %341 = vset.pattern.permute.xlu0 1
        %342 = vperm.xlu0 %341, %v295
        %v343 = vpop.permute.xlu0 %342
        %345 = vset.pattern.permute.xlu0 1
        %346 = vperm.xlu0 %345, %v296
        %v347 = vpop.permute.xlu0 %346
        %349 = vset.pattern.permute.xlu0 1
        %350 = vperm.xlu0 %349, %v297
        %v351 = vpop.permute.xlu0 %350
        %353 = vset.pattern.permute.xlu0 1
        %354 = vperm.xlu0 %353, %v298
        %v355 = vpop.permute.xlu0 %354
        %357 = vset.pattern.permute.xlu0 1
        %358 = vperm.xlu0 %357, %v299
        %v359 = vpop.permute.xlu0 %358
        %361 = vset.pattern.permute.xlu0 1
        %362 = vperm.xlu0 %361, %v300
        %v363 = vpop.permute.xlu0 %362
        %v365 = vlaneseq
        %v366 = vshrl.u32 %v365, 7
        %v367 = vsub.s32 0, %v366
        %v368 = vrot.slane %v274, %v367
        %v369 = vsub.f32 %v343, %v368
        %v370 = vsub.f32 %v347, %v368
        %v371 = vsub.f32 %v351, %v368
        %v372 = vsub.f32 %v355, %v368
        %v373 = vsub.f32 %v359, %v368
        %v374 = vsub.f32 %v363, %v368
        %375 = vset.pattern.permute.xlu0 2
        %376 = vperm.xlu0 %375, %v295
        %v377 = vpop.permute.xlu0 %376
        %379 = vset.pattern.permute.xlu0 2
        %380 = vperm.xlu0 %379, %v296
        %v381 = vpop.permute.xlu0 %380
        %383 = vset.pattern.permute.xlu0 2
        %384 = vperm.xlu0 %383, %v297
        %v385 = vpop.permute.xlu0 %384
        %387 = vset.pattern.permute.xlu0 2
        %388 = vperm.xlu0 %387, %v298
        %v389 = vpop.permute.xlu0 %388
        %391 = vset.pattern.permute.xlu0 2
        %392 = vperm.xlu0 %391, %v299
        %v393 = vpop.permute.xlu0 %392
        %395 = vset.pattern.permute.xlu0 2
        %396 = vperm.xlu0 %395, %v300
        %v397 = vpop.permute.xlu0 %396
        %v399 = vlaneseq
        %v400 = vshrl.u32 %v399, 7
        %v401 = vsub.s32 0, %v400
        %v402 = vrot.slane %v294, %v401
        %v403 = vsub.f32 %v377, %v402
        %v404 = vsub.f32 %v381, %v402
        %v405 = vsub.f32 %v385, %v402
        %v406 = vsub.f32 %v389, %v402
        %v407 = vsub.f32 %v393, %v402
        %v408 = vsub.f32 %v397, %v402
        %v409 = vmul.f32 %v335, %v335
        %v410 = vmul.f32 %v336, %v336
        %v411 = vmul.f32 %v337, %v337
        %v412 = vmul.f32 %v338, %v338
        %v413 = vmul.f32 %v339, %v339
        %v414 = vmul.f32 %v340, %v340
        %v415 = vmul.f32 %v369, %v369
        %v416 = vmul.f32 %v370, %v370
        %v417 = vmul.f32 %v371, %v371
        %v418 = vmul.f32 %v372, %v372
        %v419 = vmul.f32 %v373, %v373
        %v420 = vmul.f32 %v374, %v374
        %v421 = vadd.f32 %v409, %v415
        %v422 = vadd.f32 %v410, %v416
        %v423 = vadd.f32 %v411, %v417
        %v424 = vadd.f32 %v412, %v418
        %v425 = vadd.f32 %v413, %v419
        %v426 = vadd.f32 %v414, %v420
        %v427 = vmul.f32 %v403, %v403
        %v428 = vmul.f32 %v404, %v404
        %v429 = vmul.f32 %v405, %v405
        %v430 = vmul.f32 %v406, %v406
        %v431 = vmul.f32 %v407, %v407
        %v432 = vmul.f32 %v408, %v408
        %v433 = vadd.f32 %v421, %v427
        %v434 = vadd.f32 %v422, %v428
        %v435 = vadd.f32 %v423, %v429
        %v436 = vadd.f32 %v424, %v430
        %v437 = vadd.f32 %v425, %v431
        %v438 = vadd.f32 %v426, %v432
        %v439 = vld [vmem:[%s3] sm:$0xff]
        %v440 = vld [vmem:[%s3 + $0x8] sm:$0xff]
        %v441 = vld [vmem:[%s3 + $0x10] sm:$0xff]
        %v442 = vld [vmem:[%s3 + $0x18] sm:$0xff]
        %v443 = vld [vmem:[%s3 + $0x20] sm:$0xff]
        %v444 = vld [vmem:[%s3 + $0x28] sm:$0xff]
        %v445 = vsub.f32 0.0, %v433
        %v446 = vsub.f32 0.0, %v434
        %v447 = vsub.f32 0.0, %v435
        %v448 = vsub.f32 0.0, %v436
        %v449 = vsub.f32 0.0, %v437
        %v450 = vsub.f32 0.0, %v438
        %452 = vset.pattern.permute.xlu0 0
        %453 = vperm.xlu0 %452, %v439
        %v454 = vpop.permute.xlu0 %453
        %457 = vset.pattern.permute.xlu0 0
        %458 = vperm.xlu0 %457, %v440
        %v459 = vpop.permute.xlu0 %458
        %462 = vset.pattern.permute.xlu0 0
        %463 = vperm.xlu0 %462, %v441
        %v464 = vpop.permute.xlu0 %463
        %467 = vset.pattern.permute.xlu0 0
        %468 = vperm.xlu0 %467, %v442
        %v469 = vpop.permute.xlu0 %468
        %472 = vset.pattern.permute.xlu0 0
        %473 = vperm.xlu0 %472, %v443
        %v474 = vpop.permute.xlu0 %473
        %477 = vset.pattern.permute.xlu0 0
        %478 = vperm.xlu0 %477, %v444
        %v479 = vpop.permute.xlu0 %478
        %v481 = vmul.f32 %v445, %v454
        %v482 = vmul.f32 %v446, %v459
        %v483 = vmul.f32 %v447, %v464
        %v484 = vmul.f32 %v448, %v469
        %v485 = vmul.f32 %v449, %v474
        %v486 = vmul.f32 %v450, %v479
        %v487 = vmul.f32 %v481, 1.442695
        %v488 = vpow.pop %v487
        %v489 = vmul.f32 %v482, 1.442695
        %v490 = vpow.pop %v489
        %v491 = vmul.f32 %v483, 1.442695
        %v492 = vpow.pop %v491
        %v493 = vmul.f32 %v484, 1.442695
        %v494 = vpow.pop %v493
        %v495 = vmul.f32 %v485, 1.442695
        %v496 = vpow.pop %v495
        %v497 = vmul.f32 %v486, 1.442695
        %v498 = vpow.pop %v497
        %v499 = vmax.f32 %v488, 1e-10
        %v500 = vmax.f32 %v490, 1e-10
        %v501 = vmax.f32 %v492, 1e-10
        %v502 = vmax.f32 %v494, 1e-10
        %v503 = vmax.f32 %v496, 1e-10
        %v504 = vmax.f32 %v498, 1e-10
        %505 = vset.pattern.permute.xlu0 1
        %506 = vperm.xlu0 %505, %v439
        %v507 = vpop.permute.xlu0 %506
        %509 = vset.pattern.permute.xlu0 1
        %510 = vperm.xlu0 %509, %v440
        %v511 = vpop.permute.xlu0 %510
        %513 = vset.pattern.permute.xlu0 1
        %514 = vperm.xlu0 %513, %v441
        %v515 = vpop.permute.xlu0 %514
        %517 = vset.pattern.permute.xlu0 1
        %518 = vperm.xlu0 %517, %v442
        %v519 = vpop.permute.xlu0 %518
        %521 = vset.pattern.permute.xlu0 1
        %522 = vperm.xlu0 %521, %v443
        %v523 = vpop.permute.xlu0 %522
        %525 = vset.pattern.permute.xlu0 1
        %526 = vperm.xlu0 %525, %v444
        %v527 = vpop.permute.xlu0 %526
        %v529 = vmul.f32 %v445, %v507
        %v530 = vmul.f32 %v446, %v511
        %v531 = vmul.f32 %v447, %v515
        %v532 = vmul.f32 %v448, %v519
        %v533 = vmul.f32 %v449, %v523
        %v534 = vmul.f32 %v450, %v527
        %v535 = vmul.f32 %v529, 1.442695
        %v536 = vpow.pop %v535
        %v537 = vmul.f32 %v530, 1.442695
        %v538 = vpow.pop %v537
        %v539 = vmul.f32 %v531, 1.442695
        %v540 = vpow.pop %v539
        %v541 = vmul.f32 %v532, 1.442695
        %v542 = vpow.pop %v541
        %v543 = vmul.f32 %v533, 1.442695
        %v544 = vpow.pop %v543
        %v545 = vmul.f32 %v534, 1.442695
        %v546 = vpow.pop %v545
        %v547 = vmax.f32 %v536, 1e-10
        %v548 = vmax.f32 %v538, 1e-10
        %v549 = vmax.f32 %v540, 1e-10
        %v550 = vmax.f32 %v542, 1e-10
        %v551 = vmax.f32 %v544, 1e-10
        %v552 = vmax.f32 %v546, 1e-10
        %553 = vset.pattern.permute.xlu0 2
        %554 = vperm.xlu0 %553, %v439
        %v555 = vpop.permute.xlu0 %554
        %557 = vset.pattern.permute.xlu0 2
        %558 = vperm.xlu0 %557, %v440
        %v559 = vpop.permute.xlu0 %558
        %561 = vset.pattern.permute.xlu0 2
        %562 = vperm.xlu0 %561, %v441
        %v563 = vpop.permute.xlu0 %562
        %565 = vset.pattern.permute.xlu0 2
        %566 = vperm.xlu0 %565, %v442
        %v567 = vpop.permute.xlu0 %566
        %569 = vset.pattern.permute.xlu0 2
        %570 = vperm.xlu0 %569, %v443
        %v571 = vpop.permute.xlu0 %570
        %573 = vset.pattern.permute.xlu0 2
        %574 = vperm.xlu0 %573, %v444
        %v575 = vpop.permute.xlu0 %574
        %v577 = vmul.f32 %v445, %v555
        %v578 = vmul.f32 %v446, %v559
        %v579 = vmul.f32 %v447, %v563
        %v580 = vmul.f32 %v448, %v567
        %v581 = vmul.f32 %v449, %v571
        %v582 = vmul.f32 %v450, %v575
        %v583 = vmul.f32 %v577, 1.442695
        %v584 = vpow.pop %v583
        %v585 = vmul.f32 %v578, 1.442695
        %v586 = vpow.pop %v585
        %v587 = vmul.f32 %v579, 1.442695
        %v588 = vpow.pop %v587
        %v589 = vmul.f32 %v580, 1.442695
        %v590 = vpow.pop %v589
        %v591 = vmul.f32 %v581, 1.442695
        %v592 = vpow.pop %v591
        %v593 = vmul.f32 %v582, 1.442695
        %v594 = vpow.pop %v593
        %v595 = vmax.f32 %v584, 1e-10
        %v596 = vmax.f32 %v586, 1e-10
        %v597 = vmax.f32 %v588, 1e-10
        %v598 = vmax.f32 %v590, 1e-10
        %v599 = vmax.f32 %v592, 1e-10
        %v600 = vmax.f32 %v594, 1e-10
        %v601 = vmax.f32 %v433, %v437
        %v602 = vmax.f32 %v434, %v438
        %v603 = vmax.f32 %v601, %v602
        %v604 = vmax.f32 %v435, %v436
        %v605 = vmax.f32 %v603, %v604
        %v606 = vrot.slane %v605, 4
        %v607 = vmax.f32 %v605, %v606
        %v608 = vrot.slane %v607, 2
        %v609 = vmax.f32 %v607, %v608
        %v610 = vrot.slane %v609, 1
        %v611 = vmax.f32 %v609, %v610
        %vm612 = vcmp.eq.f32.partialorder %v433, %v611
        %vm613 = vcmp.eq.f32.partialorder %v434, %v611
        %vm614 = vcmp.eq.f32.partialorder %v435, %v611
        %vm615 = vcmp.eq.f32.partialorder %v436, %v611
        %vm616 = vcmp.eq.f32.partialorder %v437, %v611
        %vm617 = vcmp.eq.f32.partialorder %v438, %v611
        %v618 = vsel %vm612, -1.0, %v433
        %v619 = vsel %vm613, -1.0, %v434
        %v620 = vsel %vm614, -1.0, %v435
        %v621 = vsel %vm615, -1.0, %v436
        %v622 = vsel %vm616, -1.0, %v437
        %v623 = vsel %vm617, -1.0, %v438
        %v624 = vmax.f32 %v618, %v622
        %v625 = vmax.f32 %v619, %v623
        %v626 = vmax.f32 %v624, %v625
        %v627 = vmax.f32 %v620, %v621
        %v628 = vmax.f32 %v626, %v627
        %v629 = vrot.slane %v628, 4
        %v630 = vmax.f32 %v628, %v629
        %v631 = vrot.slane %v630, 2
        %v632 = vmax.f32 %v630, %v631
        %v633 = vrot.slane %v632, 1
        %v634 = vmax.f32 %v632, %v633
        %vm635 = vcmp.eq.f32.partialorder %v618, %v634
        %vm636 = vcmp.eq.f32.partialorder %v619, %v634
        %vm637 = vcmp.eq.f32.partialorder %v620, %v634
        %vm638 = vcmp.eq.f32.partialorder %v621, %v634
        %vm639 = vcmp.eq.f32.partialorder %v622, %v634
        %vm640 = vcmp.eq.f32.partialorder %v623, %v634
        %v641 = vsel %vm635, -1.0, %v618
        %v642 = vsel %vm636, -1.0, %v619
        %v643 = vsel %vm637, -1.0, %v620
        %v644 = vsel %vm638, -1.0, %v621
        %v645 = vsel %vm639, -1.0, %v622
        %v646 = vsel %vm640, -1.0, %v623
        %v647 = vmax.f32 %v641, %v645
        %v648 = vmax.f32 %v642, %v646
        %v649 = vmax.f32 %v647, %v648
        %v650 = vmax.f32 %v643, %v644
        %v651 = vmax.f32 %v649, %v650
        %v652 = vrot.slane %v651, 4
        %v653 = vmax.f32 %v651, %v652
        %v654 = vrot.slane %v653, 2
        %v655 = vmax.f32 %v653, %v654
        %v656 = vrot.slane %v655, 1
        %v657 = vmax.f32 %v655, %v656
        %vm658 = vcmp.eq.f32.partialorder %v641, %v657
        %vm659 = vcmp.eq.f32.partialorder %v642, %v657
        %vm660 = vcmp.eq.f32.partialorder %v643, %v657
        %vm661 = vcmp.eq.f32.partialorder %v644, %v657
        %vm662 = vcmp.eq.f32.partialorder %v645, %v657
        %vm663 = vcmp.eq.f32.partialorder %v646, %v657
        %v664 = vsel %vm658, -1.0, %v641
        %v665 = vsel %vm659, -1.0, %v642
        %v666 = vsel %vm660, -1.0, %v643
        %v667 = vsel %vm661, -1.0, %v644
        %v668 = vsel %vm662, -1.0, %v645
        %v669 = vsel %vm663, -1.0, %v646
        %v670 = vmax.f32 %v664, %v668
        %v671 = vmax.f32 %v665, %v669
        %v672 = vmax.f32 %v670, %v671
        %v673 = vmax.f32 %v666, %v667
        %v674 = vmax.f32 %v672, %v673
        %v675 = vrot.slane %v674, 4
        %v676 = vmax.f32 %v674, %v675
        %v677 = vrot.slane %v676, 2
        %v678 = vmax.f32 %v676, %v677
        %v679 = vrot.slane %v678, 1
        %v680 = vmax.f32 %v678, %v679
        %vm681 = vcmp.eq.f32.partialorder %v664, %v680
        %vm682 = vcmp.eq.f32.partialorder %v665, %v680
        %vm683 = vcmp.eq.f32.partialorder %v666, %v680
        %vm684 = vcmp.eq.f32.partialorder %v667, %v680
        %vm685 = vcmp.eq.f32.partialorder %v668, %v680
        %vm686 = vcmp.eq.f32.partialorder %v669, %v680
        %v687 = vsel %vm681, -1.0, %v664
        %v688 = vsel %vm682, -1.0, %v665
        %v689 = vsel %vm683, -1.0, %v666
        %v690 = vsel %vm684, -1.0, %v667
        %v691 = vsel %vm685, -1.0, %v668
        %v692 = vsel %vm686, -1.0, %v669
        %v693 = vmax.f32 %v687, %v691
        %v694 = vmax.f32 %v688, %v692
        %v695 = vmax.f32 %v693, %v694
        %v696 = vmax.f32 %v689, %v690
        %v697 = vmax.f32 %v695, %v696
        %v698 = vrot.slane %v697, 4
        %v699 = vmax.f32 %v697, %v698
        %v700 = vrot.slane %v699, 2
        %v701 = vmax.f32 %v699, %v700
        %v702 = vrot.slane %v701, 1
        %v703 = vmax.f32 %v701, %v702
        %vm704 = vcmp.eq.f32.partialorder %v687, %v703
        %vm705 = vcmp.eq.f32.partialorder %v688, %v703
        %vm706 = vcmp.eq.f32.partialorder %v689, %v703
        %vm707 = vcmp.eq.f32.partialorder %v690, %v703
        %vm708 = vcmp.eq.f32.partialorder %v691, %v703
        %vm709 = vcmp.eq.f32.partialorder %v692, %v703
        %v710 = vsel %vm704, -1.0, %v687
        %v711 = vsel %vm705, -1.0, %v688
        %v712 = vsel %vm706, -1.0, %v689
        %v713 = vsel %vm707, -1.0, %v690
        %v714 = vsel %vm708, -1.0, %v691
        %v715 = vsel %vm709, -1.0, %v692
        %v716 = vmax.f32 %v710, %v714
        %v717 = vmax.f32 %v711, %v715
        %v718 = vmax.f32 %v716, %v717
        %v719 = vmax.f32 %v712, %v713
        %v720 = vmax.f32 %v718, %v719
        %v721 = vrot.slane %v720, 4
        %v722 = vmax.f32 %v720, %v721
        %v723 = vrot.slane %v722, 2
        %v724 = vmax.f32 %v722, %v723
        %v725 = vrot.slane %v724, 1
        %v726 = vmax.f32 %v724, %v725
        %vm727 = vcmp.eq.f32.partialorder %v710, %v726
        %vm728 = vcmp.eq.f32.partialorder %v711, %v726
        %vm729 = vcmp.eq.f32.partialorder %v712, %v726
        %vm730 = vcmp.eq.f32.partialorder %v713, %v726
        %vm731 = vcmp.eq.f32.partialorder %v714, %v726
        %vm732 = vcmp.eq.f32.partialorder %v715, %v726
        %v733 = vsel %vm727, -1.0, %v710
        %v734 = vsel %vm728, -1.0, %v711
        %v735 = vsel %vm729, -1.0, %v712
        %v736 = vsel %vm730, -1.0, %v713
        %v737 = vsel %vm731, -1.0, %v714
        %v738 = vsel %vm732, -1.0, %v715
        %v739 = vmax.f32 %v733, %v737
        %v740 = vmax.f32 %v734, %v738
        %v741 = vmax.f32 %v739, %v740
        %v742 = vmax.f32 %v735, %v736
        %v743 = vmax.f32 %v741, %v742
        %v744 = vrot.slane %v743, 4
        %v745 = vmax.f32 %v743, %v744
        %v746 = vrot.slane %v745, 2
        %v747 = vmax.f32 %v745, %v746
        %v748 = vrot.slane %v747, 1
        %v749 = vmax.f32 %v747, %v748
        %vm750 = vcmp.eq.f32.partialorder %v733, %v749
        %vm751 = vcmp.eq.f32.partialorder %v734, %v749
        %vm752 = vcmp.eq.f32.partialorder %v735, %v749
        %vm753 = vcmp.eq.f32.partialorder %v736, %v749
        %vm754 = vcmp.eq.f32.partialorder %v737, %v749
        %vm755 = vcmp.eq.f32.partialorder %v738, %v749
        %v756 = vsel %vm750, -1.0, %v733
        %v757 = vsel %vm751, -1.0, %v734
        %v758 = vsel %vm752, -1.0, %v735
        %v759 = vsel %vm753, -1.0, %v736
        %v760 = vsel %vm754, -1.0, %v737
        %v761 = vsel %vm755, -1.0, %v738
        %v762 = vmax.f32 %v756, %v760
        %v763 = vmax.f32 %v757, %v761
        %v764 = vmax.f32 %v762, %v763
        %v765 = vmax.f32 %v758, %v759
        %v766 = vmax.f32 %v764, %v765
        %v767 = vrot.slane %v766, 4
        %v768 = vmax.f32 %v766, %v767
        %v769 = vrot.slane %v768, 2
        %v770 = vmax.f32 %v768, %v769
        %v771 = vrot.slane %v770, 1
        %v772 = vmax.f32 %v770, %v771
        %vm773 = vcmp.eq.f32.partialorder %v756, %v772
        %vm774 = vcmp.eq.f32.partialorder %v757, %v772
        %vm775 = vcmp.eq.f32.partialorder %v758, %v772
        %vm776 = vcmp.eq.f32.partialorder %v759, %v772
        %vm777 = vcmp.eq.f32.partialorder %v760, %v772
        %vm778 = vcmp.eq.f32.partialorder %v761, %v772
        %v779 = vsel %vm773, -1.0, %v756
        %v780 = vsel %vm774, -1.0, %v757
        %v781 = vsel %vm775, -1.0, %v758
        %v782 = vsel %vm776, -1.0, %v759
        %v783 = vsel %vm777, -1.0, %v760
        %v784 = vsel %vm778, -1.0, %v761
        %v785 = vmax.f32 %v779, %v783
        %v786 = vmax.f32 %v780, %v784
        %v787 = vmax.f32 %v785, %v786
        %v788 = vmax.f32 %v781, %v782
        %v789 = vmax.f32 %v787, %v788
        %v790 = vrot.slane %v789, 4
        %v791 = vmax.f32 %v789, %v790
        %v792 = vrot.slane %v791, 2
        %v793 = vmax.f32 %v791, %v792
        %v794 = vrot.slane %v793, 1
        %v795 = vmax.f32 %v793, %v794
        %vm796 = vcmp.eq.f32.partialorder %v779, %v795
        %vm797 = vcmp.eq.f32.partialorder %v780, %v795
        %vm798 = vcmp.eq.f32.partialorder %v781, %v795
        %vm799 = vcmp.eq.f32.partialorder %v782, %v795
        %vm800 = vcmp.eq.f32.partialorder %v783, %v795
        %vm801 = vcmp.eq.f32.partialorder %v784, %v795
        %v802 = vsel %vm796, -1.0, %v779
        %v803 = vsel %vm797, -1.0, %v780
        %v804 = vsel %vm798, -1.0, %v781
        %v805 = vsel %vm799, -1.0, %v782
        %v806 = vsel %vm800, -1.0, %v783
        %v807 = vsel %vm801, -1.0, %v784
        %v808 = vmax.f32 %v802, %v806
        %v809 = vmax.f32 %v803, %v807
        %v810 = vmax.f32 %v808, %v809
        %v811 = vmax.f32 %v804, %v805
        %v812 = vmax.f32 %v810, %v811
        %v813 = vrot.slane %v812, 4
        %v814 = vmax.f32 %v812, %v813
        %v815 = vrot.slane %v814, 2
        %v816 = vmax.f32 %v814, %v815
        %v817 = vrot.slane %v816, 1
        %v818 = vmax.f32 %v816, %v817
        %vm819 = vcmp.eq.f32.partialorder %v802, %v818
        %vm820 = vcmp.eq.f32.partialorder %v803, %v818
        %vm821 = vcmp.eq.f32.partialorder %v804, %v818
        %vm822 = vcmp.eq.f32.partialorder %v805, %v818
        %vm823 = vcmp.eq.f32.partialorder %v806, %v818
        %vm824 = vcmp.eq.f32.partialorder %v807, %v818
        %v825 = vsel %vm819, -1.0, %v802
        %v826 = vsel %vm820, -1.0, %v803
        %v827 = vsel %vm821, -1.0, %v804
        %v828 = vsel %vm822, -1.0, %v805
        %v829 = vsel %vm823, -1.0, %v806
        %v830 = vsel %vm824, -1.0, %v807
        %v831 = vmax.f32 %v825, %v829
        %v832 = vmax.f32 %v826, %v830
        %v833 = vmax.f32 %v831, %v832
        %v834 = vmax.f32 %v827, %v828
        %v835 = vmax.f32 %v833, %v834
        %v836 = vrot.slane %v835, 4
        %v837 = vmax.f32 %v835, %v836
        %v838 = vrot.slane %v837, 2
        %v839 = vmax.f32 %v837, %v838
        %v840 = vrot.slane %v839, 1
        %v841 = vmax.f32 %v839, %v840
        %vm842 = vcmp.eq.f32.partialorder %v825, %v841
        %vm843 = vcmp.eq.f32.partialorder %v826, %v841
        %vm844 = vcmp.eq.f32.partialorder %v827, %v841
        %vm845 = vcmp.eq.f32.partialorder %v828, %v841
        %vm846 = vcmp.eq.f32.partialorder %v829, %v841
        %vm847 = vcmp.eq.f32.partialorder %v830, %v841
        %v848 = vsel %vm842, -1.0, %v825
        %v849 = vsel %vm843, -1.0, %v826
        %v850 = vsel %vm844, -1.0, %v827
        %v851 = vsel %vm845, -1.0, %v828
        %v852 = vsel %vm846, -1.0, %v829
        %v853 = vsel %vm847, -1.0, %v830
        %v854 = vmax.f32 %v848, %v852
        %v855 = vmax.f32 %v849, %v853
        %v856 = vmax.f32 %v854, %v855
        %v857 = vmax.f32 %v850, %v851
        %v858 = vmax.f32 %v856, %v857
        %v859 = vrot.slane %v858, 4
        %v860 = vmax.f32 %v858, %v859
        %v861 = vrot.slane %v860, 2
        %v862 = vmax.f32 %v860, %v861
        %v863 = vrot.slane %v862, 1
        %v864 = vmax.f32 %v862, %v863
        %vm865 = vcmp.eq.f32.partialorder %v848, %v864
        %vm866 = vcmp.eq.f32.partialorder %v849, %v864
        %vm867 = vcmp.eq.f32.partialorder %v850, %v864
        %vm868 = vcmp.eq.f32.partialorder %v851, %v864
        %vm869 = vcmp.eq.f32.partialorder %v852, %v864
        %vm870 = vcmp.eq.f32.partialorder %v853, %v864
        %v871 = vsel %vm865, -1.0, %v848
        %v872 = vsel %vm866, -1.0, %v849
        %v873 = vsel %vm867, -1.0, %v850
        %v874 = vsel %vm868, -1.0, %v851
        %v875 = vsel %vm869, -1.0, %v852
        %v876 = vsel %vm870, -1.0, %v853
        %v877 = vmax.f32 %v871, %v875
        %v878 = vmax.f32 %v872, %v876
        %v879 = vmax.f32 %v877, %v878
        %v880 = vmax.f32 %v873, %v874
        %v881 = vmax.f32 %v879, %v880
        %v882 = vrot.slane %v881, 4
        %v883 = vmax.f32 %v881, %v882
        %v884 = vrot.slane %v883, 2
        %v885 = vmax.f32 %v883, %v884
        %v886 = vrot.slane %v885, 1
        %v887 = vmax.f32 %v885, %v886
        %vm888 = vcmp.eq.f32.partialorder %v871, %v887
        %vm889 = vcmp.eq.f32.partialorder %v872, %v887
        %vm890 = vcmp.eq.f32.partialorder %v873, %v887
        %vm891 = vcmp.eq.f32.partialorder %v874, %v887
        %vm892 = vcmp.eq.f32.partialorder %v875, %v887
        %vm893 = vcmp.eq.f32.partialorder %v876, %v887
        %v894 = vsel %vm888, -1.0, %v871
        %v895 = vsel %vm889, -1.0, %v872
        %v896 = vsel %vm890, -1.0, %v873
        %v897 = vsel %vm891, -1.0, %v874
        %v898 = vsel %vm892, -1.0, %v875
        %v899 = vsel %vm893, -1.0, %v876
        %v900 = vmax.f32 %v894, %v898
        %v901 = vmax.f32 %v895, %v899
        %v902 = vmax.f32 %v900, %v901
        %v903 = vmax.f32 %v896, %v897
        %v904 = vmax.f32 %v902, %v903
        %v905 = vrot.slane %v904, 4
        %v906 = vmax.f32 %v904, %v905
        %v907 = vrot.slane %v906, 2
        %v908 = vmax.f32 %v906, %v907
        %v909 = vrot.slane %v908, 1
        %v910 = vmax.f32 %v908, %v909
        %vm911 = vcmp.eq.f32.partialorder %v894, %v910
        %vm912 = vcmp.eq.f32.partialorder %v895, %v910
        %vm913 = vcmp.eq.f32.partialorder %v896, %v910
        %vm914 = vcmp.eq.f32.partialorder %v897, %v910
        %vm915 = vcmp.eq.f32.partialorder %v898, %v910
        %vm916 = vcmp.eq.f32.partialorder %v899, %v910
        %v917 = vsel %vm911, -1.0, %v894
        %v918 = vsel %vm912, -1.0, %v895
        %v919 = vsel %vm913, -1.0, %v896
        %v920 = vsel %vm914, -1.0, %v897
        %v921 = vsel %vm915, -1.0, %v898
        %v922 = vsel %vm916, -1.0, %v899
        %v923 = vmax.f32 %v917, %v921
        %v924 = vmax.f32 %v918, %v922
        %v925 = vmax.f32 %v923, %v924
        %v926 = vmax.f32 %v919, %v920
        %v927 = vmax.f32 %v925, %v926
        %v928 = vrot.slane %v927, 4
        %v929 = vmax.f32 %v927, %v928
        %v930 = vrot.slane %v929, 2
        %v931 = vmax.f32 %v929, %v930
        %v932 = vrot.slane %v931, 1
        %v933 = vmax.f32 %v931, %v932
        %vm934 = vcmp.eq.f32.partialorder %v917, %v933
        %vm935 = vcmp.eq.f32.partialorder %v918, %v933
        %vm936 = vcmp.eq.f32.partialorder %v919, %v933
        %vm937 = vcmp.eq.f32.partialorder %v920, %v933
        %vm938 = vcmp.eq.f32.partialorder %v921, %v933
        %vm939 = vcmp.eq.f32.partialorder %v922, %v933
        %v940 = vsel %vm934, -1.0, %v917
        %v941 = vsel %vm935, -1.0, %v918
        %v942 = vsel %vm936, -1.0, %v919
        %v943 = vsel %vm937, -1.0, %v920
        %v944 = vsel %vm938, -1.0, %v921
        %v945 = vsel %vm939, -1.0, %v922
        %v946 = vmax.f32 %v940, %v944
        %v947 = vmax.f32 %v941, %v945
        %v948 = vmax.f32 %v946, %v947
        %v949 = vmax.f32 %v942, %v943
        %v950 = vmax.f32 %v948, %v949
        %v951 = vrot.slane %v950, 4
        %v952 = vmax.f32 %v950, %v951
        %v953 = vrot.slane %v952, 2
        %v954 = vmax.f32 %v952, %v953
        %v955 = vrot.slane %v954, 1
        %v956 = vmax.f32 %v954, %v955
        %vm957 = vcmp.eq.f32.partialorder %v940, %v956
        %vm958 = vcmp.eq.f32.partialorder %v941, %v956
        %vm959 = vcmp.eq.f32.partialorder %v942, %v956
        %vm960 = vcmp.eq.f32.partialorder %v943, %v956
        %vm961 = vcmp.eq.f32.partialorder %v944, %v956
        %vm962 = vcmp.eq.f32.partialorder %v945, %v956
        %v963 = vsel %vm957, -1.0, %v940
        %v964 = vsel %vm958, -1.0, %v941
        %v965 = vsel %vm959, -1.0, %v942
        %v966 = vsel %vm960, -1.0, %v943
        %v967 = vsel %vm961, -1.0, %v944
        %v968 = vsel %vm962, -1.0, %v945
        %vm969 = vcmp.ge.f32.partialorder %v963, 0.0
        %vm970 = vcmp.ge.f32.partialorder %v964, 0.0
        %vm971 = vcmp.ge.f32.partialorder %v965, 0.0
        %vm972 = vcmp.ge.f32.partialorder %v966, 0.0
        %vm973 = vcmp.ge.f32.partialorder %v967, 0.0
        %vm974 = vcmp.ge.f32.partialorder %v968, 0.0
        %v975 = vsel %vm969, %v499, 0.0
        %v976 = vsel %vm970, %v500, 0.0
        %v977 = vsel %vm971, %v501, 0.0
        %v978 = vsel %vm972, %v502, 0.0
        %v979 = vsel %vm973, %v503, 0.0
        %v980 = vsel %vm974, %v504, 0.0
        %v981 = vsel %vm969, %v547, 0.0
        %v982 = vsel %vm970, %v548, 0.0
        %v983 = vsel %vm971, %v549, 0.0
        %v984 = vsel %vm972, %v550, 0.0
        %v985 = vsel %vm973, %v551, 0.0
        %v986 = vsel %vm974, %v552, 0.0
        %v987 = vsel %vm969, %v595, 0.0
        %v988 = vsel %vm970, %v596, 0.0
        %v989 = vsel %vm971, %v597, 0.0
        %v990 = vsel %vm972, %v598, 0.0
        %v991 = vsel %vm973, %v599, 0.0
        %v992 = vsel %vm974, %v600, 0.0
        %v993 = vld [vmem:[%s4] sm:$0xff]
        %v994 = vld [vmem:[%s4 + $0x8] sm:$0xff]
        %v995 = vld [vmem:[%s4 + $0x10] sm:$0xff]
        %v996 = vld [vmem:[%s4 + $0x18] sm:$0xff]
        %v997 = vld [vmem:[%s4 + $0x20] sm:$0xff]
        %v998 = vld [vmem:[%s4 + $0x28] sm:$0xff]
        %1000 = vset.pattern.permute.xlu0 0
        %1001 = vperm.xlu0 %1000, %v993
        %v1002 = vpop.permute.xlu0 %1001
        %1005 = vset.pattern.permute.xlu0 0
        %1006 = vperm.xlu0 %1005, %v994
        %v1007 = vpop.permute.xlu0 %1006
        %1010 = vset.pattern.permute.xlu0 0
        %1011 = vperm.xlu0 %1010, %v995
        %v1012 = vpop.permute.xlu0 %1011
        %1015 = vset.pattern.permute.xlu0 0
        %1016 = vperm.xlu0 %1015, %v996
        %v1017 = vpop.permute.xlu0 %1016
        %1020 = vset.pattern.permute.xlu0 0
        %1021 = vperm.xlu0 %1020, %v997
        %v1022 = vpop.permute.xlu0 %1021
        %1025 = vset.pattern.permute.xlu0 0
        %1026 = vperm.xlu0 %1025, %v998
        %v1027 = vpop.permute.xlu0 %1026
        %v1029 = vmul.f32 %v975, %v1002
        %v1030 = vmul.f32 %v976, %v1007
        %v1031 = vmul.f32 %v977, %v1012
        %v1032 = vmul.f32 %v978, %v1017
        %v1033 = vmul.f32 %v979, %v1022
        %v1034 = vmul.f32 %v980, %v1027
        %v1035 = vadd.f32 %v1029, %v1030
        %v1036 = vadd.f32 %v1035, %v1031
        %v1037 = vadd.f32 %v1036, %v1032
        %v1038 = vadd.f32 %v1037, %v1033
        %v1039 = vadd.f32 %v1038, %v1034
        %v1040 = vrot.slane %v1039, 4
        %v1041 = vadd.f32 %v1039, %v1040
        %v1042 = vrot.slane %v1041, 2
        %v1043 = vadd.f32 %v1041, %v1042
        %v1044 = vrot.slane %v1043, 1
        %v1045 = vadd.f32 %v1043, %v1044
        %v1046 = vadd.f32 %v975, %v976
        %v1047 = vadd.f32 %v1046, %v977
        %v1048 = vadd.f32 %v1047, %v978
        %v1049 = vadd.f32 %v1048, %v979
        %v1050 = vadd.f32 %v1049, %v980
        %v1051 = vrot.slane %v1050, 4
        %v1052 = vadd.f32 %v1050, %v1051
        %v1053 = vrot.slane %v1052, 2
        %v1054 = vadd.f32 %v1052, %v1053
        %v1055 = vrot.slane %v1054, 1
        %v1056 = vadd.f32 %v1054, %v1055
        %v1057 = vrcp.pop %v1056
        %v1058 = vmul.f32 %v1045, %v1057
        %v1059 = vadd.f32 %v254, %v1058
        %1060 = vst [vmem:[%s233] sm:$0x1] %v1059
        %1061 = vset.pattern.permute.xlu0 1
        %1062 = vperm.xlu0 %1061, %v993
        %v1063 = vpop.permute.xlu0 %1062
        %1065 = vset.pattern.permute.xlu0 1
        %1066 = vperm.xlu0 %1065, %v994
        %v1067 = vpop.permute.xlu0 %1066
        %1069 = vset.pattern.permute.xlu0 1
        %1070 = vperm.xlu0 %1069, %v995
        %v1071 = vpop.permute.xlu0 %1070
        %1073 = vset.pattern.permute.xlu0 1
        %1074 = vperm.xlu0 %1073, %v996
        %v1075 = vpop.permute.xlu0 %1074
        %1077 = vset.pattern.permute.xlu0 1
        %1078 = vperm.xlu0 %1077, %v997
        %v1079 = vpop.permute.xlu0 %1078
        %1081 = vset.pattern.permute.xlu0 1
        %1082 = vperm.xlu0 %1081, %v998
        %v1083 = vpop.permute.xlu0 %1082
        %v1085 = vmul.f32 %v981, %v1063
        %v1086 = vmul.f32 %v982, %v1067
        %v1087 = vmul.f32 %v983, %v1071
        %v1088 = vmul.f32 %v984, %v1075
        %v1089 = vmul.f32 %v985, %v1079
        %v1090 = vmul.f32 %v986, %v1083
        %v1091 = vadd.f32 %v1085, %v1086
        %v1092 = vadd.f32 %v1091, %v1087
        %v1093 = vadd.f32 %v1092, %v1088
        %v1094 = vadd.f32 %v1093, %v1089
        %v1095 = vadd.f32 %v1094, %v1090
        %v1096 = vrot.slane %v1095, 4
        %v1097 = vadd.f32 %v1095, %v1096
        %v1098 = vrot.slane %v1097, 2
        %v1099 = vadd.f32 %v1097, %v1098
        %v1100 = vrot.slane %v1099, 1
        %v1101 = vadd.f32 %v1099, %v1100
        %v1102 = vadd.f32 %v981, %v982
        %v1103 = vadd.f32 %v1102, %v983
        %v1104 = vadd.f32 %v1103, %v984
        %v1105 = vadd.f32 %v1104, %v985
        %v1106 = vadd.f32 %v1105, %v986
        %v1107 = vrot.slane %v1106, 4
        %v1108 = vadd.f32 %v1106, %v1107
        %v1109 = vrot.slane %v1108, 2
        %v1110 = vadd.f32 %v1108, %v1109
        %v1111 = vrot.slane %v1110, 1
        %v1112 = vadd.f32 %v1110, %v1111
        %v1113 = vrcp.pop %v1112
        %v1114 = vmul.f32 %v1101, %v1113
        %v1115 = vadd.f32 %v274, %v1114
        %1116 = vst [vmem:[%s233 + $0x1] sm:$0x1] %v1115
        %1117 = vset.pattern.permute.xlu0 2
        %1118 = vperm.xlu0 %1117, %v993
        %v1119 = vpop.permute.xlu0 %1118
        %1121 = vset.pattern.permute.xlu0 2
        %1122 = vperm.xlu0 %1121, %v994
        %v1123 = vpop.permute.xlu0 %1122
        %1125 = vset.pattern.permute.xlu0 2
        %1126 = vperm.xlu0 %1125, %v995
        %v1127 = vpop.permute.xlu0 %1126
        %1129 = vset.pattern.permute.xlu0 2
        %1130 = vperm.xlu0 %1129, %v996
        %v1131 = vpop.permute.xlu0 %1130
        %1133 = vset.pattern.permute.xlu0 2
        %1134 = vperm.xlu0 %1133, %v997
        %v1135 = vpop.permute.xlu0 %1134
        %1137 = vset.pattern.permute.xlu0 2
        %1138 = vperm.xlu0 %1137, %v998
        %v1139 = vpop.permute.xlu0 %1138
        %v1141 = vmul.f32 %v987, %v1119
        %v1142 = vmul.f32 %v988, %v1123
        %v1143 = vmul.f32 %v989, %v1127
        %v1144 = vmul.f32 %v990, %v1131
        %v1145 = vmul.f32 %v991, %v1135
        %v1146 = vmul.f32 %v992, %v1139
        %v1147 = vadd.f32 %v1141, %v1142
        %v1148 = vadd.f32 %v1147, %v1143
        %v1149 = vadd.f32 %v1148, %v1144
        %v1150 = vadd.f32 %v1149, %v1145
        %v1151 = vadd.f32 %v1150, %v1146
        %v1152 = vrot.slane %v1151, 4
        %v1153 = vadd.f32 %v1151, %v1152
        %v1154 = vrot.slane %v1153, 2
        %v1155 = vadd.f32 %v1153, %v1154
        %v1156 = vrot.slane %v1155, 1
        %v1157 = vadd.f32 %v1155, %v1156
        %v1158 = vadd.f32 %v987, %v988
        %v1159 = vadd.f32 %v1158, %v989
        %v1160 = vadd.f32 %v1159, %v990
        %v1161 = vadd.f32 %v1160, %v991
        %v1162 = vadd.f32 %v1161, %v992
        %v1163 = vrot.slane %v1162, 4
        %v1164 = vadd.f32 %v1162, %v1163
        %v1165 = vrot.slane %v1164, 2
        %v1166 = vadd.f32 %v1164, %v1165
        %v1167 = vrot.slane %v1166, 1
        %v1168 = vadd.f32 %v1166, %v1167
        %v1169 = vrcp.pop %v1168
        %v1170 = vmul.f32 %v1157, %v1169
        %v1171 = vadd.f32 %v294, %v1170
        %1172 = vst [vmem:[%s233 + $0x2] sm:$0x1] %v1171
        %p1173 = scmp.lt.s32.totalorder %s17, 1
        %s1174 = scalar_select %p1173, %s17, 1
        %s1175 = smul.addr %s1174, 4
        %s1176 = scalar_lea.vmem %s5, %s1175
        // Predicated region
        $region45: #{warp_kpt_forward.1} parent=39 // pred_check
          %p1177 = pneg %p145
        $region46: #{warp_kpt_forward.1} parent=39 // pred_check_branch
          %1179 = sbr.rel (%p1177) target = $region48
        $region47: #{warp_kpt_forward.1} parent=39 // pred_region
          _
        $region48: #{warp_kpt_forward.1} parent=39 // pred_fallthru
          _
      $region40: #{warp_kpt_forward.1} parent=5 // pred_fallthru
        _
      %p1180 = scmp.le.s32.totalorder 2, %s12
      // Predicated region
      $region49: #{warp_kpt_forward.1} parent=5 // pred_check
        %p1181 = pneg %p1180
      $region50: #{warp_kpt_forward.1} parent=5 // pred_check_branch
        %1183 = sbr.rel (%p1181) target = $region52
      $region51: #{warp_kpt_forward.1} parent=5 // pred_region
        %s1184 = ssub.s32 %s12, 2
        // Predicated region
        $region53: #{warp_kpt_forward.1} parent=51 // pred_check
          %p1185 = pneg %p151
        $region54: #{warp_kpt_forward.1} parent=51 // pred_check_branch
          %1187 = sbr.rel (%p1185) target = $region56
        $region55: #{warp_kpt_forward.1} parent=51 // pred_region
          %p1188 = scmp.lt.s32.totalorder %s18, 1
          %s1189 = scalar_select %p1188, %s18, 1
          %s1190 = smul.addr %s1189, 4
          %s1191 = scalar_lea.vmem %s5, %s1190
        $region56: #{warp_kpt_forward.1} parent=51 // pred_fallthru
          _
      $region52: #{warp_kpt_forward.1} parent=5 // pred_fallthru
        _
    $region6: #{warp_kpt_forward.1} parent=1 // loop_footer
      %s16 = sadd.s32 1, %s12
    $region7: #{warp_kpt_forward.1} parent=1 // loop_footer_branch
      %11 = sbr.rel target = $region3
    $region8: #{warp_kpt_forward.1} parent=1 // loop_exit
      _
    %1192 = vsyncpa [#allocation3], 1
    %s1193 = scalar_lea.sflag [#allocation3], 1
    %1194 = vsyncpa %s1193, 1

</llo_original>
